<compile_context>
chip_gen: v5e
topology: v5e:2x2
jax: 0.10.0
libtpu: 0.0.40
codegen_flags: <defaults>
</compile_context>

<pallas_src>
import math

import jax
import jax.numpy as jnp
from jax.experimental import pallas as pl
from jax.experimental.pallas import tpu as pltpu

# ---- small synthetic BERT config ----
VOCAB = 128
MAX_POS = 64
TYPE_VOCAB = 2
HIDDEN = 32
NUM_HEADS = 4
HEAD_DIM = HIDDEN // NUM_HEADS
INTERMEDIATE = 64
NUM_LAYERS = 2
NUM_LABELS = 3
LN_EPS = 1e-12


# ---------------- shared math helpers (used in-kernel and by the pure-JAX reference) ----------------
def _layernorm(x, g, b):
    mu = jnp.mean(x, axis=-1, keepdims=True)
    var = jnp.mean((x - mu) ** 2, axis=-1, keepdims=True)
    return (x - mu) * jax.lax.rsqrt(var + LN_EPS) * g + b


def _gelu(x):
    # TODO(synk): HF BERT uses exact (erf) GELU; tanh approximation used for robust TPU lowering.
    c = math.sqrt(2.0 / math.pi)
    return 0.5 * x * (1.0 + jnp.tanh(c * (x + 0.044715 * x * x * x)))


# ---------------- fused Pallas kernel: embeddings -> L encoder layers -> CLS -> classifier ----------------
def fused_bert_kernel(ids_ref, wemb_ref, pos_ref, typ_ref, eg_ref, eb_ref,
                      wqkv_ref, bqkv_ref, wo_ref, bo_ref,
                      ln1g_ref, ln1b_ref, w1_ref, b1_ref, w2_ref, b2_ref,
                      ln2g_ref, ln2b_ref, clsw_ref, clsb_ref,
                      o_ref):
    N = ids_ref.shape[0]          # B * S (flattened tokens)
    S, H = pos_ref.shape
    B = N // S
    V = wemb_ref.shape[0]

    # ---- Embeddings, fused in-kernel.
    # Word embedding gather as a one-hot matmul: (N, V) @ (V, H), K=V=128 is MXU friendly.
    onehot = (ids_ref[...] == jax.lax.broadcasted_iota(jnp.int32, (N, V), 1)
              ).astype(jnp.float32)                                             # (N, V)
    emb = jnp.dot(onehot, wemb_ref[...], preferred_element_type=jnp.float32)    # (N, H)
    # Position embeddings tiled over the batch (leading-dim concat only).
    pos = jnp.concatenate([pos_ref[...]] * B, axis=0)                           # (N, H)
    # token_type_ids=None -> every token uses type-0 embedding.
    emb = emb + pos + typ_ref[0:1, :]
    x = _layernorm(emb, eg_ref[...], eb_ref[...])                               # (N, H)

    # ---- Encoder layers: static unroll; weights stay VMEM-resident, x stays in vregs/VMEM.
    for l in range(NUM_LAYERS):
        # Fused QKV: ONE lane-dense (N, H) @ (H, 3H) dot (Q part pre-scaled by 1/sqrt(head_dim)).
        qkv = jnp.dot(x, wqkv_ref[l], preferred_element_type=jnp.float32) + bqkv_ref[l]   # (N, 3H)

        def split_heads(off):
            # Static 8-lane slices -> (NUM_HEADS, N, dh) -> (NUM_HEADS*B, S, dh).
            # Row-major order makes axis 0 enumerate (head, batch) pairs, so attention below never
            # mixes tokens of different sequences (attention_mask=None -> no masking needed).
            hs = jnp.stack([qkv[:, off + h * HEAD_DIM: off + (h + 1) * HEAD_DIM]
                            for h in range(NUM_HEADS)])
            return hs.reshape(NUM_HEADS * B, S, HEAD_DIM)

        q = split_heads(0)
        k = split_heads(HIDDEN)
        v = split_heads(2 * HIDDEN)

        # Attention over all (head, batch) pairs: two leading-batch 3-D einsums.
        s = jnp.einsum('gsd,gtd->gst', q, k, preferred_element_type=jnp.float32)
        s = s - jnp.max(s, axis=-1, keepdims=True)
        p = jnp.exp(s)
        p = p / jnp.sum(p, axis=-1, keepdims=True)          # exact softmax (numerical parity)
        ctx = jnp.einsum('gst,gtd->gsd', p, v, preferred_element_type=jnp.float32)   # (NH*B, S, dh)

        # Merge heads back to a lane-dense (N, H) layout, then ONE K=H output-projection dot.
        ctx_h = ctx.reshape(NUM_HEADS, N, HEAD_DIM)
        ctx2 = jnp.concatenate([ctx_h[h] for h in range(NUM_HEADS)], axis=-1)         # (N, H)
        attn = jnp.dot(ctx2, wo_ref[l], preferred_element_type=jnp.float32) + bo_ref[l]

        h1 = _layernorm(x + attn, ln1g_ref[l], ln1b_ref[l])

        ff = jnp.dot(h1, w1_ref[l], preferred_element_type=jnp.float32) + b1_ref[l]
        ff = _gelu(ff)
        ff = jnp.dot(ff, w2_ref[l], preferred_element_type=jnp.float32) + b2_ref[l]
        x = _layernorm(h1 + ff, ln2g_ref[l], ln2b_ref[l])

    # Classifier epilogue: last_hidden_state[:, 0, :] -> Dropout(p=0.05) is identity at inference
    # -> Linear(H, NUM_LABELS).  (The reference module has no pooler.)
    cls = x.reshape(B, S, H)[:, 0, :]                                                 # (B, H)
    logits = jnp.dot(cls, clsw_ref[...], preferred_element_type=jnp.float32) + clsb_ref[...]
    o_ref[...] = logits.astype(o_ref.dtype)


# ---------------- wrapper: a single grid-less pallas_call ----------------
def bert_for_seq_cls(kp, ipt_idx):
    """Forward pass mirroring BertForSeqCls.forward (attention_mask=None, token_type_ids=None)."""
    B, S = ipt_idx.shape
    ids = ipt_idx.reshape(B * S, 1).astype(jnp.int32)   # flattened token ids for the in-kernel gather
    args = (ids, kp["word_emb"], kp["pos_emb"][:S], kp["type_emb"],
            kp["emb_ln_g"], kp["emb_ln_b"],
            kp["wqkv"], kp["bqkv"], kp["wo"], kp["bo"],
            kp["ln1_g"], kp["ln1_b"], kp["w1"], kp["b1"], kp["w2"], kp["b2"],
            kp["ln2_g"], kp["ln2_b"], kp["cls_w"], kp["cls_b"])
    # Whole-array, VMEM-resident, no grid / no tiling on any TPU generation: total footprint is
    # far below even v7x's 64 MiB VMEM, and any grid would only add per-step overhead.
    vmem_spec = pl.BlockSpec(memory_space=pltpu.MemorySpace.VMEM)
    return pl.pallas_call(
        fused_bert_kernel,
        out_shape=jax.ShapeDtypeStruct((B, NUM_LABELS), jnp.float32),
        in_specs=[vmem_spec] * len(args),
        out_specs=vmem_spec,
    )(*args)


# ---------------- parameter init (HF-like layout, deterministic, synthetic) ----------------
def init_params(key):
    def normal(k, shape):
        return 0.02 * jax.random.normal(k, shape, jnp.float32)

    keys = iter(jax.random.split(key, 64))
    params = {
        "word_emb": normal(next(keys), (VOCAB, HIDDEN)),
        "pos_emb": normal(next(keys), (MAX_POS, HIDDEN)),
        "type_emb": normal(next(keys), (TYPE_VOCAB, HIDDEN)),
        "emb_ln_g": jnp.ones((1, HIDDEN), jnp.float32),
        "emb_ln_b": jnp.zeros((1, HIDDEN), jnp.float32),
        "layers": [],
        "cls_w": normal(next(keys), (HIDDEN, NUM_LABELS)),
        "cls_b": jnp.zeros((1, NUM_LABELS), jnp.float32),
    }
    for _ in range(NUM_LAYERS):
        lp = {
            "wq": normal(next(keys), (HIDDEN, HIDDEN)), "bq": jnp.zeros((1, HIDDEN), jnp.float32),
            "wk": normal(next(keys), (HIDDEN, HIDDEN)), "bk": jnp.zeros((1, HIDDEN), jnp.float32),
            "wv": normal(next(keys), (HIDDEN, HIDDEN)), "bv": jnp.zeros((1, HIDDEN), jnp.float32),
            "wo": normal(next(keys), (HIDDEN, HIDDEN)), "bo": jnp.zeros((1, HIDDEN), jnp.float32),
            "ln1_g": jnp.ones((1, HIDDEN), jnp.float32), "ln1_b": jnp.zeros((1, HIDDEN), jnp.float32),
            "w1": normal(next(keys), (HIDDEN, INTERMEDIATE)), "b1": jnp.zeros((1, INTERMEDIATE), jnp.float32),
            "w2": normal(next(keys), (INTERMEDIATE, HIDDEN)), "b2": jnp.zeros((1, HIDDEN), jnp.float32),
            "ln2_g": jnp.ones((1, HIDDEN), jnp.float32), "ln2_b": jnp.zeros((1, HIDDEN), jnp.float32),
        }
        params["layers"].append(lp)
    return params


def prepare_kernel_params(params):
    """One-time repack into the fused-kernel layout:
       * per-layer tensors stacked on a leading NUM_LAYERS axis,
       * QKV fused along the output dim -> (L, H, 3H) so the kernel does ONE lane-dense dot,
       * 1/sqrt(head_dim) folded into the Q weights/bias (outside the hot path),
       * wo kept as (L, H, H) so the output projection is ONE K=H dot."""
    scale = 1.0 / math.sqrt(HEAD_DIM)

    wqkv, bqkv = [], []
    rest = {k: [] for k in ("wo", "bo", "ln1_g", "ln1_b", "w1", "b1", "w2", "b2", "ln2_g", "ln2_b")}
    for lp in params["layers"]:
        wqkv.append(jnp.concatenate([lp["wq"] * scale, lp["wk"], lp["wv"]], axis=1))   # (H, 3H)
        bqkv.append(jnp.concatenate([lp["bq"] * scale, lp["bk"], lp["bv"]], axis=1))   # (1, 3H)
        for k in rest:
            rest[k].append(lp[k])

    kp = {
        "word_emb": params["word_emb"], "pos_emb": params["pos_emb"], "type_emb": params["type_emb"],
        "emb_ln_g": params["emb_ln_g"], "emb_ln_b": params["emb_ln_b"],
        "wqkv": jnp.stack(wqkv), "bqkv": jnp.stack(bqkv),
        "cls_w": params["cls_w"], "cls_b": params["cls_b"],
    }
    for k, v in rest.items():
        kp[k] = jnp.stack(v)
    return kp


# ---------------- pure-JAX reference (for a correctness check) ----------------
def bert_reference(params, ipt_idx):
    B, S = ipt_idx.shape
    emb = (params["word_emb"][ipt_idx]
           + params["pos_emb"][:S][None, :, :]
           + params["type_emb"][0][None, None, :])
    x = _layernorm(emb, params["emb_ln_g"], params["emb_ln_b"])
    for lp in params["layers"]:
        q = x @ lp["wq"] + lp["bq"]
        k = x @ lp["wk"] + lp["bk"]
        v = x @ lp["wv"] + lp["bv"]

        def split(t):
            return jnp.transpose(t.reshape(B, S, NUM_HEADS, HEAD_DIM), (0, 2, 1, 3))

        qh, kh, vh = split(q), split(k), split(v)
        s = jnp.einsum('bhsd,bhtd->bhst', qh, kh) / math.sqrt(HEAD_DIM)
        p = jax.nn.softmax(s, axis=-1)
        ctx = jnp.einsum('bhst,bhtd->bhsd', p, vh)
        ctx = jnp.transpose(ctx, (0, 2, 1, 3)).reshape(B, S, HIDDEN)
        attn = ctx @ lp["wo"] + lp["bo"]
        h1 = _layernorm(x + attn, lp["ln1_g"], lp["ln1_b"])
        ff = _gelu(h1 @ lp["w1"] + lp["b1"]) @ lp["w2"] + lp["b2"]
        x = _layernorm(h1 + ff, lp["ln2_g"], lp["ln2_b"])
    cls = x[:, 0, :]
    return cls @ params["cls_w"] + params["cls_b"]


if __name__ == "__main__":
    key = jax.random.PRNGKey(0)
    k_params, k_ids = jax.random.split(key)
    params = init_params(k_params)
    kp = prepare_kernel_params(params)

    B, S = 2, 8
    ipt_idx = jax.random.randint(k_ids, (B, S), 0, VOCAB, dtype=jnp.int32)

    logits = jax.jit(bert_for_seq_cls)(kp, ipt_idx)
    jax.block_until_ready(logits)
    assert logits.shape == (B, NUM_LABELS)

    ref = bert_reference(params, ipt_idx)
    assert jnp.allclose(logits, ref, atol=5e-3, rtol=5e-2), (logits, ref)
    print("KERNEL_OK")
</pallas_src>

<mosaic_0001>
module attributes {stable_mosaic.version = 11 : i64} {
  func.func @fused_bert_kernel(%arg0: memref<16x1xi32, #tpu.memory_space<vmem>>, %arg1: memref<128x32xf32, #tpu.memory_space<vmem>>, %arg2: memref<8x32xf32, #tpu.memory_space<vmem>>, %arg3: memref<2x32xf32, #tpu.memory_space<vmem>>, %arg4: memref<1x32xf32, #tpu.memory_space<vmem>>, %arg5: memref<1x32xf32, #tpu.memory_space<vmem>>, %arg6: memref<2x32x96xf32, #tpu.memory_space<vmem>>, %arg7: memref<2x1x96xf32, #tpu.memory_space<vmem>>, %arg8: memref<2x32x32xf32, #tpu.memory_space<vmem>>, %arg9: memref<2x1x32xf32, #tpu.memory_space<vmem>>, %arg10: memref<2x1x32xf32, #tpu.memory_space<vmem>>, %arg11: memref<2x1x32xf32, #tpu.memory_space<vmem>>, %arg12: memref<2x32x64xf32, #tpu.memory_space<vmem>>, %arg13: memref<2x1x64xf32, #tpu.memory_space<vmem>>, %arg14: memref<2x64x32xf32, #tpu.memory_space<vmem>>, %arg15: memref<2x1x32xf32, #tpu.memory_space<vmem>>, %arg16: memref<2x1x32xf32, #tpu.memory_space<vmem>>, %arg17: memref<2x1x32xf32, #tpu.memory_space<vmem>>, %arg18: memref<32x3xf32, #tpu.memory_space<vmem>>, %arg19: memref<1x3xf32, #tpu.memory_space<vmem>>, %arg20: memref<2x3xf32, #tpu.memory_space<vmem>>) attributes {dimension_semantics = [], scalar_prefetch = 0 : i64, scratch_operands = 0 : i64, tpu.core_type = #tpu.core_type<tc>} {
    %c0 = arith.constant 0 : index
    %c0_0 = arith.constant 0 : index
    %0 = vector.load %arg0[%c0, %c0_0] : memref<16x1xi32, #tpu.memory_space<vmem>>, vector<16x1xi32>
    %1 = tpu.iota {dimensions = array<i32: 1>} : vector<16x128xi32>
    %2 = vector.broadcast %0 : vector<16x1xi32> to vector<16x128xi32>
    %3 = arith.cmpi eq, %2, %1 : vector<16x128xi32>
    %4 = arith.extui %3 : vector<16x128xi1> to vector<16x128xi32>
    %5 = arith.sitofp %4 : vector<16x128xi32> to vector<16x128xf32>
    %c0_1 = arith.constant 0 : index
    %c0_2 = arith.constant 0 : index
    %6 = vector.load %arg1[%c0_1, %c0_2] : memref<128x32xf32, #tpu.memory_space<vmem>>, vector<128x32xf32>
    %cst = arith.constant dense<0.000000e+00> : vector<16x32xf32>
    %7 = tpu.matmul %5, %6, %cst {dimension_numbers = #tpu.dot_dimension_numbers<[1], [0], [0], [1], [0, 0, 1, 1], [], []>} : vector<16x128xf32>, vector<128x32xf32>, vector<16x32xf32> -> vector<16x32xf32>
    %c0_3 = arith.constant 0 : index
    %c0_4 = arith.constant 0 : index
    %8 = vector.load %arg2[%c0_3, %c0_4] : memref<8x32xf32, #tpu.memory_space<vmem>>, vector<8x32xf32>
    %9 = tpu.concatenate %8, %8 in 0 : vector<8x32xf32>, vector<8x32xf32> -> vector<16x32xf32>
    %10 = arith.addf %7, %9 : vector<16x32xf32>
    %c0_5 = arith.constant 0 : index
    %c0_6 = arith.constant 0 : index
    %11 = vector.load %arg3[%c0_5, %c0_6] : memref<2x32xf32, #tpu.memory_space<vmem>>, vector<1x32xf32>
    %12 = vector.broadcast %11 : vector<1x32xf32> to vector<16x32xf32>
    %13 = arith.addf %10, %12 : vector<16x32xf32>
    %c0_7 = arith.constant 0 : index
    %c0_8 = arith.constant 0 : index
    %14 = vector.load %arg4[%c0_7, %c0_8] : memref<1x32xf32, #tpu.memory_space<vmem>>, vector<1x32xf32>
    %c0_9 = arith.constant 0 : index
    %c0_10 = arith.constant 0 : index
    %15 = vector.load %arg5[%c0_9, %c0_10] : memref<1x32xf32, #tpu.memory_space<vmem>>, vector<1x32xf32>
    %cst_11 = arith.constant dense<0.000000e+00> : vector<16xf32>
    %16 = vector.multi_reduction <add>, %13, %cst_11 [1] : vector<16x32xf32> to vector<16xf32>
    %17 = vector.shape_cast %16 : vector<16xf32> to vector<16x1xf32>
    %cst_12 = arith.constant 3.200000e+01 : f32
    %18 = vector.broadcast %cst_12 : f32 to vector<16x1xf32>
    %19 = arith.divf %17, %18 : vector<16x1xf32>
    %20 = vector.broadcast %19 : vector<16x1xf32> to vector<16x32xf32>
    %21 = arith.subf %13, %20 : vector<16x32xf32>
    %22 = arith.mulf %21, %21 : vector<16x32xf32>
    %cst_13 = arith.constant dense<0.000000e+00> : vector<16xf32>
    %23 = vector.multi_reduction <add>, %22, %cst_13 [1] : vector<16x32xf32> to vector<16xf32>
    %24 = vector.shape_cast %23 : vector<16xf32> to vector<16x1xf32>
    %cst_14 = arith.constant 3.200000e+01 : f32
    %25 = vector.broadcast %cst_14 : f32 to vector<16x1xf32>
    %26 = arith.divf %24, %25 : vector<16x1xf32>
    %27 = vector.broadcast %19 : vector<16x1xf32> to vector<16x32xf32>
    %28 = arith.subf %13, %27 : vector<16x32xf32>
    %cst_15 = arith.constant 9.99999996E-13 : f32
    %29 = vector.broadcast %cst_15 : f32 to vector<16x1xf32>
    %30 = arith.addf %26, %29 : vector<16x1xf32>
    %31 = math.rsqrt %30 : vector<16x1xf32>
    %32 = vector.broadcast %31 : vector<16x1xf32> to vector<16x32xf32>
    %33 = arith.mulf %28, %32 : vector<16x32xf32>
    %34 = vector.broadcast %14 : vector<1x32xf32> to vector<16x32xf32>
    %35 = arith.mulf %33, %34 : vector<16x32xf32>
    %36 = vector.broadcast %15 : vector<1x32xf32> to vector<16x32xf32>
    %37 = arith.addf %35, %36 : vector<16x32xf32>
    %c0_16 = arith.constant 0 : index
    %c0_17 = arith.constant 0 : index
    %c0_18 = arith.constant 0 : index
    %38 = vector.load %arg6[%c0_16, %c0_17, %c0_18] : memref<2x32x96xf32, #tpu.memory_space<vmem>>, vector<1x32x96xf32>
    %39 = vector.shape_cast %38 : vector<1x32x96xf32> to vector<32x96xf32>
    %cst_19 = arith.constant dense<0.000000e+00> : vector<16x96xf32>
    %40 = tpu.matmul %37, %39, %cst_19 {dimension_numbers = #tpu.dot_dimension_numbers<[1], [0], [0], [1], [0, 0, 1, 1], [], []>} : vector<16x32xf32>, vector<32x96xf32>, vector<16x96xf32> -> vector<16x96xf32>
    %c0_20 = arith.constant 0 : index
    %c0_21 = arith.constant 0 : index
    %c0_22 = arith.constant 0 : index
    %41 = vector.load %arg7[%c0_20, %c0_21, %c0_22] : memref<2x1x96xf32, #tpu.memory_space<vmem>>, vector<1x1x96xf32>
    %42 = vector.shape_cast %41 : vector<1x1x96xf32> to vector<1x96xf32>
    %43 = vector.broadcast %42 : vector<1x96xf32> to vector<16x96xf32>
    %44 = arith.addf %40, %43 : vector<16x96xf32>
    %45 = vector.extract_strided_slice %44 {offsets = [0, 0], sizes = [16, 8], strides = [1, 1]} : vector<16x96xf32> to vector<16x8xf32>
    %46 = vector.extract_strided_slice %44 {offsets = [0, 8], sizes = [16, 8], strides = [1, 1]} : vector<16x96xf32> to vector<16x8xf32>
    %47 = vector.extract_strided_slice %44 {offsets = [0, 16], sizes = [16, 8], strides = [1, 1]} : vector<16x96xf32> to vector<16x8xf32>
    %48 = vector.extract_strided_slice %44 {offsets = [0, 24], sizes = [16, 8], strides = [1, 1]} : vector<16x96xf32> to vector<16x8xf32>
    %49 = vector.shape_cast %45 : vector<16x8xf32> to vector<1x16x8xf32>
    %50 = vector.shape_cast %46 : vector<16x8xf32> to vector<1x16x8xf32>
    %51 = vector.shape_cast %47 : vector<16x8xf32> to vector<1x16x8xf32>
    %52 = vector.shape_cast %48 : vector<16x8xf32> to vector<1x16x8xf32>
    %53 = tpu.concatenate %49, %50, %51, %52 in 0 : vector<1x16x8xf32>, vector<1x16x8xf32>, vector<1x16x8xf32>, vector<1x16x8xf32> -> vector<4x16x8xf32>
    %54 = vector.shape_cast %53 : vector<4x16x8xf32> to vector<8x8x8xf32>
    %55 = vector.extract_strided_slice %44 {offsets = [0, 32], sizes = [16, 8], strides = [1, 1]} : vector<16x96xf32> to vector<16x8xf32>
    %56 = vector.extract_strided_slice %44 {offsets = [0, 40], sizes = [16, 8], strides = [1, 1]} : vector<16x96xf32> to vector<16x8xf32>
    %57 = vector.extract_strided_slice %44 {offsets = [0, 48], sizes = [16, 8], strides = [1, 1]} : vector<16x96xf32> to vector<16x8xf32>
    %58 = vector.extract_strided_slice %44 {offsets = [0, 56], sizes = [16, 8], strides = [1, 1]} : vector<16x96xf32> to vector<16x8xf32>
    %59 = vector.shape_cast %55 : vector<16x8xf32> to vector<1x16x8xf32>
    %60 = vector.shape_cast %56 : vector<16x8xf32> to vector<1x16x8xf32>
    %61 = vector.shape_cast %57 : vector<16x8xf32> to vector<1x16x8xf32>
    %62 = vector.shape_cast %58 : vector<16x8xf32> to vector<1x16x8xf32>
    %63 = tpu.concatenate %59, %60, %61, %62 in 0 : vector<1x16x8xf32>, vector<1x16x8xf32>, vector<1x16x8xf32>, vector<1x16x8xf32> -> vector<4x16x8xf32>
    %64 = vector.shape_cast %63 : vector<4x16x8xf32> to vector<8x8x8xf32>
    %65 = vector.extract_strided_slice %44 {offsets = [0, 64], sizes = [16, 8], strides = [1, 1]} : vector<16x96xf32> to vector<16x8xf32>
    %66 = vector.extract_strided_slice %44 {offsets = [0, 72], sizes = [16, 8], strides = [1, 1]} : vector<16x96xf32> to vector<16x8xf32>
    %67 = vector.extract_strided_slice %44 {offsets = [0, 80], sizes = [16, 8], strides = [1, 1]} : vector<16x96xf32> to vector<16x8xf32>
    %68 = vector.extract_strided_slice %44 {offsets = [0, 88], sizes = [16, 8], strides = [1, 1]} : vector<16x96xf32> to vector<16x8xf32>
    %69 = vector.shape_cast %65 : vector<16x8xf32> to vector<1x16x8xf32>
    %70 = vector.shape_cast %66 : vector<16x8xf32> to vector<1x16x8xf32>
    %71 = vector.shape_cast %67 : vector<16x8xf32> to vector<1x16x8xf32>
    %72 = vector.shape_cast %68 : vector<16x8xf32> to vector<1x16x8xf32>
    %73 = tpu.concatenate %69, %70, %71, %72 in 0 : vector<1x16x8xf32>, vector<1x16x8xf32>, vector<1x16x8xf32>, vector<1x16x8xf32> -> vector<4x16x8xf32>
    %74 = vector.shape_cast %73 : vector<4x16x8xf32> to vector<8x8x8xf32>
    "tpu.trace_start"() <{level = 10 : i32, message = "gsd,gtd->gst"}> : () -> ()
    %cst_23 = arith.constant dense<0.000000e+00> : vector<8x8x8xf32>
    %75 = tpu.matmul %54, %64, %cst_23 {dimension_numbers = #tpu.dot_dimension_numbers<[2], [2], [1], [1], [0, 0, 0, 1, 1, 1], [0], [0]>} : vector<8x8x8xf32>, vector<8x8x8xf32>, vector<8x8x8xf32> -> vector<8x8x8xf32>
    "tpu.trace_stop"() : () -> ()
    %cst_24 = arith.constant dense<0xFF800000> : vector<8x8xf32>
    %76 = vector.multi_reduction <maximumf>, %75, %cst_24 [2] : vector<8x8x8xf32> to vector<8x8xf32>
    %77 = vector.shape_cast %76 : vector<8x8xf32> to vector<8x8x1xf32>
    %78 = vector.broadcast %77 : vector<8x8x1xf32> to vector<8x8x8xf32>
    %79 = arith.subf %75, %78 : vector<8x8x8xf32>
    %80 = math.exp %79 : vector<8x8x8xf32>
    %cst_25 = arith.constant dense<0.000000e+00> : vector<8x8xf32>
    %81 = vector.multi_reduction <add>, %80, %cst_25 [2] : vector<8x8x8xf32> to vector<8x8xf32>
    %82 = vector.shape_cast %81 : vector<8x8xf32> to vector<8x8x1xf32>
    %83 = vector.broadcast %82 : vector<8x8x1xf32> to vector<8x8x8xf32>
    %84 = arith.divf %80, %83 : vector<8x8x8xf32>
    "tpu.trace_start"() <{level = 10 : i32, message = "gst,gtd->gsd"}> : () -> ()
    %cst_26 = arith.constant dense<0.000000e+00> : vector<8x8x8xf32>
    %85 = tpu.matmul %84, %74, %cst_26 {dimension_numbers = #tpu.dot_dimension_numbers<[2], [1], [1], [2], [0, 0, 0, 1, 1, 2], [0], [0]>} : vector<8x8x8xf32>, vector<8x8x8xf32>, vector<8x8x8xf32> -> vector<8x8x8xf32>
    "tpu.trace_stop"() : () -> ()
    %86 = vector.shape_cast %85 : vector<8x8x8xf32> to vector<4x16x8xf32>
    %87 = vector.extract_strided_slice %86 {offsets = [0, 0, 0], sizes = [1, 16, 8], strides = [1, 1, 1]} : vector<4x16x8xf32> to vector<1x16x8xf32>
    %88 = vector.shape_cast %87 : vector<1x16x8xf32> to vector<16x8xf32>
    %89 = vector.extract_strided_slice %86 {offsets = [1, 0, 0], sizes = [1, 16, 8], strides = [1, 1, 1]} : vector<4x16x8xf32> to vector<1x16x8xf32>
    %90 = vector.shape_cast %89 : vector<1x16x8xf32> to vector<16x8xf32>
    %91 = vector.extract_strided_slice %86 {offsets = [2, 0, 0], sizes = [1, 16, 8], strides = [1, 1, 1]} : vector<4x16x8xf32> to vector<1x16x8xf32>
    %92 = vector.shape_cast %91 : vector<1x16x8xf32> to vector<16x8xf32>
    %93 = vector.extract_strided_slice %86 {offsets = [3, 0, 0], sizes = [1, 16, 8], strides = [1, 1, 1]} : vector<4x16x8xf32> to vector<1x16x8xf32>
    %94 = vector.shape_cast %93 : vector<1x16x8xf32> to vector<16x8xf32>
    %95 = tpu.concatenate %88, %90, %92, %94 in 1 : vector<16x8xf32>, vector<16x8xf32>, vector<16x8xf32>, vector<16x8xf32> -> vector<16x32xf32>
    %c0_27 = arith.constant 0 : index
    %c0_28 = arith.constant 0 : index
    %c0_29 = arith.constant 0 : index
    %96 = vector.load %arg8[%c0_27, %c0_28, %c0_29] : memref<2x32x32xf32, #tpu.memory_space<vmem>>, vector<1x32x32xf32>
    %97 = vector.shape_cast %96 : vector<1x32x32xf32> to vector<32x32xf32>
    %cst_30 = arith.constant dense<0.000000e+00> : vector<16x32xf32>
    %98 = tpu.matmul %95, %97, %cst_30 {dimension_numbers = #tpu.dot_dimension_numbers<[1], [0], [0], [1], [0, 0, 1, 1], [], []>} : vector<16x32xf32>, vector<32x32xf32>, vector<16x32xf32> -> vector<16x32xf32>
    %c0_31 = arith.constant 0 : index
    %c0_32 = arith.constant 0 : index
    %c0_33 = arith.constant 0 : index
    %99 = vector.load %arg9[%c0_31, %c0_32, %c0_33] : memref<2x1x32xf32, #tpu.memory_space<vmem>>, vector<1x1x32xf32>
    %100 = vector.shape_cast %99 : vector<1x1x32xf32> to vector<1x32xf32>
    %101 = vector.broadcast %100 : vector<1x32xf32> to vector<16x32xf32>
    %102 = arith.addf %98, %101 : vector<16x32xf32>
    %103 = arith.addf %37, %102 : vector<16x32xf32>
    %c0_34 = arith.constant 0 : index
    %c0_35 = arith.constant 0 : index
    %c0_36 = arith.constant 0 : index
    %104 = vector.load %arg10[%c0_34, %c0_35, %c0_36] : memref<2x1x32xf32, #tpu.memory_space<vmem>>, vector<1x1x32xf32>
    %105 = vector.shape_cast %104 : vector<1x1x32xf32> to vector<1x32xf32>
    %c0_37 = arith.constant 0 : index
    %c0_38 = arith.constant 0 : index
    %c0_39 = arith.constant 0 : index
    %106 = vector.load %arg11[%c0_37, %c0_38, %c0_39] : memref<2x1x32xf32, #tpu.memory_space<vmem>>, vector<1x1x32xf32>
    %107 = vector.shape_cast %106 : vector<1x1x32xf32> to vector<1x32xf32>
    %cst_40 = arith.constant dense<0.000000e+00> : vector<16xf32>
    %108 = vector.multi_reduction <add>, %103, %cst_40 [1] : vector<16x32xf32> to vector<16xf32>
    %109 = vector.shape_cast %108 : vector<16xf32> to vector<16x1xf32>
    %cst_41 = arith.constant 3.200000e+01 : f32
    %110 = vector.broadcast %cst_41 : f32 to vector<16x1xf32>
    %111 = arith.divf %109, %110 : vector<16x1xf32>
    %112 = vector.broadcast %111 : vector<16x1xf32> to vector<16x32xf32>
    %113 = arith.subf %103, %112 : vector<16x32xf32>
    %114 = arith.mulf %113, %113 : vector<16x32xf32>
    %cst_42 = arith.constant dense<0.000000e+00> : vector<16xf32>
    %115 = vector.multi_reduction <add>, %114, %cst_42 [1] : vector<16x32xf32> to vector<16xf32>
    %116 = vector.shape_cast %115 : vector<16xf32> to vector<16x1xf32>
    %cst_43 = arith.constant 3.200000e+01 : f32
    %117 = vector.broadcast %cst_43 : f32 to vector<16x1xf32>
    %118 = arith.divf %116, %117 : vector<16x1xf32>
    %119 = vector.broadcast %111 : vector<16x1xf32> to vector<16x32xf32>
    %120 = arith.subf %103, %119 : vector<16x32xf32>
    %cst_44 = arith.constant 9.99999996E-13 : f32
    %121 = vector.broadcast %cst_44 : f32 to vector<16x1xf32>
    %122 = arith.addf %118, %121 : vector<16x1xf32>
    %123 = math.rsqrt %122 : vector<16x1xf32>
    %124 = vector.broadcast %123 : vector<16x1xf32> to vector<16x32xf32>
    %125 = arith.mulf %120, %124 : vector<16x32xf32>
    %126 = vector.broadcast %105 : vector<1x32xf32> to vector<16x32xf32>
    %127 = arith.mulf %125, %126 : vector<16x32xf32>
    %128 = vector.broadcast %107 : vector<1x32xf32> to vector<16x32xf32>
    %129 = arith.addf %127, %128 : vector<16x32xf32>
    %c0_45 = arith.constant 0 : index
    %c0_46 = arith.constant 0 : index
    %c0_47 = arith.constant 0 : index
    %130 = vector.load %arg12[%c0_45, %c0_46, %c0_47] : memref<2x32x64xf32, #tpu.memory_space<vmem>>, vector<1x32x64xf32>
    %131 = vector.shape_cast %130 : vector<1x32x64xf32> to vector<32x64xf32>
    %cst_48 = arith.constant dense<0.000000e+00> : vector<16x64xf32>
    %132 = tpu.matmul %129, %131, %cst_48 {dimension_numbers = #tpu.dot_dimension_numbers<[1], [0], [0], [1], [0, 0, 1, 1], [], []>} : vector<16x32xf32>, vector<32x64xf32>, vector<16x64xf32> -> vector<16x64xf32>
    %c0_49 = arith.constant 0 : index
    %c0_50 = arith.constant 0 : index
    %c0_51 = arith.constant 0 : index
    %133 = vector.load %arg13[%c0_49, %c0_50, %c0_51] : memref<2x1x64xf32, #tpu.memory_space<vmem>>, vector<1x1x64xf32>
    %134 = vector.shape_cast %133 : vector<1x1x64xf32> to vector<1x64xf32>
    %135 = vector.broadcast %134 : vector<1x64xf32> to vector<16x64xf32>
    %136 = arith.addf %132, %135 : vector<16x64xf32>
    %cst_52 = arith.constant 5.000000e-01 : f32
    %137 = vector.broadcast %cst_52 : f32 to vector<16x64xf32>
    %138 = arith.mulf %137, %136 : vector<16x64xf32>
    %cst_53 = arith.constant 4.471500e-02 : f32
    %139 = vector.broadcast %cst_53 : f32 to vector<16x64xf32>
    %140 = arith.mulf %139, %136 : vector<16x64xf32>
    %141 = arith.mulf %140, %136 : vector<16x64xf32>
    %142 = arith.mulf %141, %136 : vector<16x64xf32>
    %143 = arith.addf %136, %142 : vector<16x64xf32>
    %cst_54 = arith.constant 0.797884583 : f32
    %144 = vector.broadcast %cst_54 : f32 to vector<16x64xf32>
    %145 = arith.mulf %144, %143 : vector<16x64xf32>
    %146 = math.tanh %145 : vector<16x64xf32>
    %cst_55 = arith.constant 1.000000e+00 : f32
    %147 = vector.broadcast %cst_55 : f32 to vector<16x64xf32>
    %148 = arith.addf %147, %146 : vector<16x64xf32>
    %149 = arith.mulf %138, %148 : vector<16x64xf32>
    %c0_56 = arith.constant 0 : index
    %c0_57 = arith.constant 0 : index
    %c0_58 = arith.constant 0 : index
    %150 = vector.load %arg14[%c0_56, %c0_57, %c0_58] : memref<2x64x32xf32, #tpu.memory_space<vmem>>, vector<1x64x32xf32>
    %151 = vector.shape_cast %150 : vector<1x64x32xf32> to vector<64x32xf32>
    %cst_59 = arith.constant dense<0.000000e+00> : vector<16x32xf32>
    %152 = tpu.matmul %149, %151, %cst_59 {dimension_numbers = #tpu.dot_dimension_numbers<[1], [0], [0], [1], [0, 0, 1, 1], [], []>} : vector<16x64xf32>, vector<64x32xf32>, vector<16x32xf32> -> vector<16x32xf32>
    %c0_60 = arith.constant 0 : index
    %c0_61 = arith.constant 0 : index
    %c0_62 = arith.constant 0 : index
    %153 = vector.load %arg15[%c0_60, %c0_61, %c0_62] : memref<2x1x32xf32, #tpu.memory_space<vmem>>, vector<1x1x32xf32>
    %154 = vector.shape_cast %153 : vector<1x1x32xf32> to vector<1x32xf32>
    %155 = vector.broadcast %154 : vector<1x32xf32> to vector<16x32xf32>
    %156 = arith.addf %152, %155 : vector<16x32xf32>
    %157 = arith.addf %129, %156 : vector<16x32xf32>
    %c0_63 = arith.constant 0 : index
    %c0_64 = arith.constant 0 : index
    %c0_65 = arith.constant 0 : index
    %158 = vector.load %arg16[%c0_63, %c0_64, %c0_65] : memref<2x1x32xf32, #tpu.memory_space<vmem>>, vector<1x1x32xf32>
    %159 = vector.shape_cast %158 : vector<1x1x32xf32> to vector<1x32xf32>
    %c0_66 = arith.constant 0 : index
    %c0_67 = arith.constant 0 : index
    %c0_68 = arith.constant 0 : index
    %160 = vector.load %arg17[%c0_66, %c0_67, %c0_68] : memref<2x1x32xf32, #tpu.memory_space<vmem>>, vector<1x1x32xf32>
    %161 = vector.shape_cast %160 : vector<1x1x32xf32> to vector<1x32xf32>
    %cst_69 = arith.constant dense<0.000000e+00> : vector<16xf32>
    %162 = vector.multi_reduction <add>, %157, %cst_69 [1] : vector<16x32xf32> to vector<16xf32>
    %163 = vector.shape_cast %162 : vector<16xf32> to vector<16x1xf32>
    %cst_70 = arith.constant 3.200000e+01 : f32
    %164 = vector.broadcast %cst_70 : f32 to vector<16x1xf32>
    %165 = arith.divf %163, %164 : vector<16x1xf32>
    %166 = vector.broadcast %165 : vector<16x1xf32> to vector<16x32xf32>
    %167 = arith.subf %157, %166 : vector<16x32xf32>
    %168 = arith.mulf %167, %167 : vector<16x32xf32>
    %cst_71 = arith.constant dense<0.000000e+00> : vector<16xf32>
    %169 = vector.multi_reduction <add>, %168, %cst_71 [1] : vector<16x32xf32> to vector<16xf32>
    %170 = vector.shape_cast %169 : vector<16xf32> to vector<16x1xf32>
    %cst_72 = arith.constant 3.200000e+01 : f32
    %171 = vector.broadcast %cst_72 : f32 to vector<16x1xf32>
    %172 = arith.divf %170, %171 : vector<16x1xf32>
    %173 = vector.broadcast %165 : vector<16x1xf32> to vector<16x32xf32>
    %174 = arith.subf %157, %173 : vector<16x32xf32>
    %cst_73 = arith.constant 9.99999996E-13 : f32
    %175 = vector.broadcast %cst_73 : f32 to vector<16x1xf32>
    %176 = arith.addf %172, %175 : vector<16x1xf32>
    %177 = math.rsqrt %176 : vector<16x1xf32>
    %178 = vector.broadcast %177 : vector<16x1xf32> to vector<16x32xf32>
    %179 = arith.mulf %174, %178 : vector<16x32xf32>
    %180 = vector.broadcast %159 : vector<1x32xf32> to vector<16x32xf32>
    %181 = arith.mulf %179, %180 : vector<16x32xf32>
    %182 = vector.broadcast %161 : vector<1x32xf32> to vector<16x32xf32>
    %183 = arith.addf %181, %182 : vector<16x32xf32>
    %c1 = arith.constant 1 : index
    %c0_74 = arith.constant 0 : index
    %c0_75 = arith.constant 0 : index
    %184 = vector.load %arg6[%c1, %c0_74, %c0_75] : memref<2x32x96xf32, #tpu.memory_space<vmem>>, vector<1x32x96xf32>
    %185 = vector.shape_cast %184 : vector<1x32x96xf32> to vector<32x96xf32>
    %cst_76 = arith.constant dense<0.000000e+00> : vector<16x96xf32>
    %186 = tpu.matmul %183, %185, %cst_76 {dimension_numbers = #tpu.dot_dimension_numbers<[1], [0], [0], [1], [0, 0, 1, 1], [], []>} : vector<16x32xf32>, vector<32x96xf32>, vector<16x96xf32> -> vector<16x96xf32>
    %c1_77 = arith.constant 1 : index
    %c0_78 = arith.constant 0 : index
    %c0_79 = arith.constant 0 : index
    %187 = vector.load %arg7[%c1_77, %c0_78, %c0_79] : memref<2x1x96xf32, #tpu.memory_space<vmem>>, vector<1x1x96xf32>
    %188 = vector.shape_cast %187 : vector<1x1x96xf32> to vector<1x96xf32>
    %189 = vector.broadcast %188 : vector<1x96xf32> to vector<16x96xf32>
    %190 = arith.addf %186, %189 : vector<16x96xf32>
    %191 = vector.extract_strided_slice %190 {offsets = [0, 0], sizes = [16, 8], strides = [1, 1]} : vector<16x96xf32> to vector<16x8xf32>
    %192 = vector.extract_strided_slice %190 {offsets = [0, 8], sizes = [16, 8], strides = [1, 1]} : vector<16x96xf32> to vector<16x8xf32>
    %193 = vector.extract_strided_slice %190 {offsets = [0, 16], sizes = [16, 8], strides = [1, 1]} : vector<16x96xf32> to vector<16x8xf32>
    %194 = vector.extract_strided_slice %190 {offsets = [0, 24], sizes = [16, 8], strides = [1, 1]} : vector<16x96xf32> to vector<16x8xf32>
    %195 = vector.shape_cast %191 : vector<16x8xf32> to vector<1x16x8xf32>
    %196 = vector.shape_cast %192 : vector<16x8xf32> to vector<1x16x8xf32>
    %197 = vector.shape_cast %193 : vector<16x8xf32> to vector<1x16x8xf32>
    %198 = vector.shape_cast %194 : vector<16x8xf32> to vector<1x16x8xf32>
    %199 = tpu.concatenate %195, %196, %197, %198 in 0 : vector<1x16x8xf32>, vector<1x16x8xf32>, vector<1x16x8xf32>, vector<1x16x8xf32> -> vector<4x16x8xf32>
    %200 = vector.shape_cast %199 : vector<4x16x8xf32> to vector<8x8x8xf32>
    %201 = vector.extract_strided_slice %190 {offsets = [0, 32], sizes = [16, 8], strides = [1, 1]} : vector<16x96xf32> to vector<16x8xf32>
    %202 = vector.extract_strided_slice %190 {offsets = [0, 40], sizes = [16, 8], strides = [1, 1]} : vector<16x96xf32> to vector<16x8xf32>
    %203 = vector.extract_strided_slice %190 {offsets = [0, 48], sizes = [16, 8], strides = [1, 1]} : vector<16x96xf32> to vector<16x8xf32>
    %204 = vector.extract_strided_slice %190 {offsets = [0, 56], sizes = [16, 8], strides = [1, 1]} : vector<16x96xf32> to vector<16x8xf32>
    %205 = vector.shape_cast %201 : vector<16x8xf32> to vector<1x16x8xf32>
    %206 = vector.shape_cast %202 : vector<16x8xf32> to vector<1x16x8xf32>
    %207 = vector.shape_cast %203 : vector<16x8xf32> to vector<1x16x8xf32>
    %208 = vector.shape_cast %204 : vector<16x8xf32> to vector<1x16x8xf32>
    %209 = tpu.concatenate %205, %206, %207, %208 in 0 : vector<1x16x8xf32>, vector<1x16x8xf32>, vector<1x16x8xf32>, vector<1x16x8xf32> -> vector<4x16x8xf32>
    %210 = vector.shape_cast %209 : vector<4x16x8xf32> to vector<8x8x8xf32>
    %211 = vector.extract_strided_slice %190 {offsets = [0, 64], sizes = [16, 8], strides = [1, 1]} : vector<16x96xf32> to vector<16x8xf32>
    %212 = vector.extract_strided_slice %190 {offsets = [0, 72], sizes = [16, 8], strides = [1, 1]} : vector<16x96xf32> to vector<16x8xf32>
    %213 = vector.extract_strided_slice %190 {offsets = [0, 80], sizes = [16, 8], strides = [1, 1]} : vector<16x96xf32> to vector<16x8xf32>
    %214 = vector.extract_strided_slice %190 {offsets = [0, 88], sizes = [16, 8], strides = [1, 1]} : vector<16x96xf32> to vector<16x8xf32>
    %215 = vector.shape_cast %211 : vector<16x8xf32> to vector<1x16x8xf32>
    %216 = vector.shape_cast %212 : vector<16x8xf32> to vector<1x16x8xf32>
    %217 = vector.shape_cast %213 : vector<16x8xf32> to vector<1x16x8xf32>
    %218 = vector.shape_cast %214 : vector<16x8xf32> to vector<1x16x8xf32>
    %219 = tpu.concatenate %215, %216, %217, %218 in 0 : vector<1x16x8xf32>, vector<1x16x8xf32>, vector<1x16x8xf32>, vector<1x16x8xf32> -> vector<4x16x8xf32>
    %220 = vector.shape_cast %219 : vector<4x16x8xf32> to vector<8x8x8xf32>
    "tpu.trace_start"() <{level = 10 : i32, message = "gsd,gtd->gst"}> : () -> ()
    %cst_80 = arith.constant dense<0.000000e+00> : vector<8x8x8xf32>
    %221 = tpu.matmul %200, %210, %cst_80 {dimension_numbers = #tpu.dot_dimension_numbers<[2], [2], [1], [1], [0, 0, 0, 1, 1, 1], [0], [0]>} : vector<8x8x8xf32>, vector<8x8x8xf32>, vector<8x8x8xf32> -> vector<8x8x8xf32>
    "tpu.trace_stop"() : () -> ()
    %cst_81 = arith.constant dense<0xFF800000> : vector<8x8xf32>
    %222 = vector.multi_reduction <maximumf>, %221, %cst_81 [2] : vector<8x8x8xf32> to vector<8x8xf32>
    %223 = vector.shape_cast %222 : vector<8x8xf32> to vector<8x8x1xf32>
    %224 = vector.broadcast %223 : vector<8x8x1xf32> to vector<8x8x8xf32>
    %225 = arith.subf %221, %224 : vector<8x8x8xf32>
    %226 = math.exp %225 : vector<8x8x8xf32>
    %cst_82 = arith.constant dense<0.000000e+00> : vector<8x8xf32>
    %227 = vector.multi_reduction <add>, %226, %cst_82 [2] : vector<8x8x8xf32> to vector<8x8xf32>
    %228 = vector.shape_cast %227 : vector<8x8xf32> to vector<8x8x1xf32>
    %229 = vector.broadcast %228 : vector<8x8x1xf32> to vector<8x8x8xf32>
    %230 = arith.divf %226, %229 : vector<8x8x8xf32>
    "tpu.trace_start"() <{level = 10 : i32, message = "gst,gtd->gsd"}> : () -> ()
    %cst_83 = arith.constant dense<0.000000e+00> : vector<8x8x8xf32>
    %231 = tpu.matmul %230, %220, %cst_83 {dimension_numbers = #tpu.dot_dimension_numbers<[2], [1], [1], [2], [0, 0, 0, 1, 1, 2], [0], [0]>} : vector<8x8x8xf32>, vector<8x8x8xf32>, vector<8x8x8xf32> -> vector<8x8x8xf32>
    "tpu.trace_stop"() : () -> ()
    %232 = vector.shape_cast %231 : vector<8x8x8xf32> to vector<4x16x8xf32>
    %233 = vector.extract_strided_slice %232 {offsets = [0, 0, 0], sizes = [1, 16, 8], strides = [1, 1, 1]} : vector<4x16x8xf32> to vector<1x16x8xf32>
    %234 = vector.shape_cast %233 : vector<1x16x8xf32> to vector<16x8xf32>
    %235 = vector.extract_strided_slice %232 {offsets = [1, 0, 0], sizes = [1, 16, 8], strides = [1, 1, 1]} : vector<4x16x8xf32> to vector<1x16x8xf32>
    %236 = vector.shape_cast %235 : vector<1x16x8xf32> to vector<16x8xf32>
    %237 = vector.extract_strided_slice %232 {offsets = [2, 0, 0], sizes = [1, 16, 8], strides = [1, 1, 1]} : vector<4x16x8xf32> to vector<1x16x8xf32>
    %238 = vector.shape_cast %237 : vector<1x16x8xf32> to vector<16x8xf32>
    %239 = vector.extract_strided_slice %232 {offsets = [3, 0, 0], sizes = [1, 16, 8], strides = [1, 1, 1]} : vector<4x16x8xf32> to vector<1x16x8xf32>
    %240 = vector.shape_cast %239 : vector<1x16x8xf32> to vector<16x8xf32>
    %241 = tpu.concatenate %234, %236, %238, %240 in 1 : vector<16x8xf32>, vector<16x8xf32>, vector<16x8xf32>, vector<16x8xf32> -> vector<16x32xf32>
    %c1_84 = arith.constant 1 : index
    %c0_85 = arith.constant 0 : index
    %c0_86 = arith.constant 0 : index
    %242 = vector.load %arg8[%c1_84, %c0_85, %c0_86] : memref<2x32x32xf32, #tpu.memory_space<vmem>>, vector<1x32x32xf32>
    %243 = vector.shape_cast %242 : vector<1x32x32xf32> to vector<32x32xf32>
    %cst_87 = arith.constant dense<0.000000e+00> : vector<16x32xf32>
    %244 = tpu.matmul %241, %243, %cst_87 {dimension_numbers = #tpu.dot_dimension_numbers<[1], [0], [0], [1], [0, 0, 1, 1], [], []>} : vector<16x32xf32>, vector<32x32xf32>, vector<16x32xf32> -> vector<16x32xf32>
    %c1_88 = arith.constant 1 : index
    %c0_89 = arith.constant 0 : index
    %c0_90 = arith.constant 0 : index
    %245 = vector.load %arg9[%c1_88, %c0_89, %c0_90] : memref<2x1x32xf32, #tpu.memory_space<vmem>>, vector<1x1x32xf32>
    %246 = vector.shape_cast %245 : vector<1x1x32xf32> to vector<1x32xf32>
    %247 = vector.broadcast %246 : vector<1x32xf32> to vector<16x32xf32>
    %248 = arith.addf %244, %247 : vector<16x32xf32>
    %249 = arith.addf %183, %248 : vector<16x32xf32>
    %c1_91 = arith.constant 1 : index
    %c0_92 = arith.constant 0 : index
    %c0_93 = arith.constant 0 : index
    %250 = vector.load %arg10[%c1_91, %c0_92, %c0_93] : memref<2x1x32xf32, #tpu.memory_space<vmem>>, vector<1x1x32xf32>
    %251 = vector.shape_cast %250 : vector<1x1x32xf32> to vector<1x32xf32>
    %c1_94 = arith.constant 1 : index
    %c0_95 = arith.constant 0 : index
    %c0_96 = arith.constant 0 : index
    %252 = vector.load %arg11[%c1_94, %c0_95, %c0_96] : memref<2x1x32xf32, #tpu.memory_space<vmem>>, vector<1x1x32xf32>
    %253 = vector.shape_cast %252 : vector<1x1x32xf32> to vector<1x32xf32>
    %cst_97 = arith.constant dense<0.000000e+00> : vector<16xf32>
    %254 = vector.multi_reduction <add>, %249, %cst_97 [1] : vector<16x32xf32> to vector<16xf32>
    %255 = vector.shape_cast %254 : vector<16xf32> to vector<16x1xf32>
    %cst_98 = arith.constant 3.200000e+01 : f32
    %256 = vector.broadcast %cst_98 : f32 to vector<16x1xf32>
    %257 = arith.divf %255, %256 : vector<16x1xf32>
    %258 = vector.broadcast %257 : vector<16x1xf32> to vector<16x32xf32>
    %259 = arith.subf %249, %258 : vector<16x32xf32>
    %260 = arith.mulf %259, %259 : vector<16x32xf32>
    %cst_99 = arith.constant dense<0.000000e+00> : vector<16xf32>
    %261 = vector.multi_reduction <add>, %260, %cst_99 [1] : vector<16x32xf32> to vector<16xf32>
    %262 = vector.shape_cast %261 : vector<16xf32> to vector<16x1xf32>
    %cst_100 = arith.constant 3.200000e+01 : f32
    %263 = vector.broadcast %cst_100 : f32 to vector<16x1xf32>
    %264 = arith.divf %262, %263 : vector<16x1xf32>
    %265 = vector.broadcast %257 : vector<16x1xf32> to vector<16x32xf32>
    %266 = arith.subf %249, %265 : vector<16x32xf32>
    %cst_101 = arith.constant 9.99999996E-13 : f32
    %267 = vector.broadcast %cst_101 : f32 to vector<16x1xf32>
    %268 = arith.addf %264, %267 : vector<16x1xf32>
    %269 = math.rsqrt %268 : vector<16x1xf32>
    %270 = vector.broadcast %269 : vector<16x1xf32> to vector<16x32xf32>
    %271 = arith.mulf %266, %270 : vector<16x32xf32>
    %272 = vector.broadcast %251 : vector<1x32xf32> to vector<16x32xf32>
    %273 = arith.mulf %271, %272 : vector<16x32xf32>
    %274 = vector.broadcast %253 : vector<1x32xf32> to vector<16x32xf32>
    %275 = arith.addf %273, %274 : vector<16x32xf32>
    %c1_102 = arith.constant 1 : index
    %c0_103 = arith.constant 0 : index
    %c0_104 = arith.constant 0 : index
    %276 = vector.load %arg12[%c1_102, %c0_103, %c0_104] : memref<2x32x64xf32, #tpu.memory_space<vmem>>, vector<1x32x64xf32>
    %277 = vector.shape_cast %276 : vector<1x32x64xf32> to vector<32x64xf32>
    %cst_105 = arith.constant dense<0.000000e+00> : vector<16x64xf32>
    %278 = tpu.matmul %275, %277, %cst_105 {dimension_numbers = #tpu.dot_dimension_numbers<[1], [0], [0], [1], [0, 0, 1, 1], [], []>} : vector<16x32xf32>, vector<32x64xf32>, vector<16x64xf32> -> vector<16x64xf32>
    %c1_106 = arith.constant 1 : index
    %c0_107 = arith.constant 0 : index
    %c0_108 = arith.constant 0 : index
    %279 = vector.load %arg13[%c1_106, %c0_107, %c0_108] : memref<2x1x64xf32, #tpu.memory_space<vmem>>, vector<1x1x64xf32>
    %280 = vector.shape_cast %279 : vector<1x1x64xf32> to vector<1x64xf32>
    %281 = vector.broadcast %280 : vector<1x64xf32> to vector<16x64xf32>
    %282 = arith.addf %278, %281 : vector<16x64xf32>
    %cst_109 = arith.constant 5.000000e-01 : f32
    %283 = vector.broadcast %cst_109 : f32 to vector<16x64xf32>
    %284 = arith.mulf %283, %282 : vector<16x64xf32>
    %cst_110 = arith.constant 4.471500e-02 : f32
    %285 = vector.broadcast %cst_110 : f32 to vector<16x64xf32>
    %286 = arith.mulf %285, %282 : vector<16x64xf32>
    %287 = arith.mulf %286, %282 : vector<16x64xf32>
    %288 = arith.mulf %287, %282 : vector<16x64xf32>
    %289 = arith.addf %282, %288 : vector<16x64xf32>
    %cst_111 = arith.constant 0.797884583 : f32
    %290 = vector.broadcast %cst_111 : f32 to vector<16x64xf32>
    %291 = arith.mulf %290, %289 : vector<16x64xf32>
    %292 = math.tanh %291 : vector<16x64xf32>
    %cst_112 = arith.constant 1.000000e+00 : f32
    %293 = vector.broadcast %cst_112 : f32 to vector<16x64xf32>
    %294 = arith.addf %293, %292 : vector<16x64xf32>
    %295 = arith.mulf %284, %294 : vector<16x64xf32>
    %c1_113 = arith.constant 1 : index
    %c0_114 = arith.constant 0 : index
    %c0_115 = arith.constant 0 : index
    %296 = vector.load %arg14[%c1_113, %c0_114, %c0_115] : memref<2x64x32xf32, #tpu.memory_space<vmem>>, vector<1x64x32xf32>
    %297 = vector.shape_cast %296 : vector<1x64x32xf32> to vector<64x32xf32>
    %cst_116 = arith.constant dense<0.000000e+00> : vector<16x32xf32>
    %298 = tpu.matmul %295, %297, %cst_116 {dimension_numbers = #tpu.dot_dimension_numbers<[1], [0], [0], [1], [0, 0, 1, 1], [], []>} : vector<16x64xf32>, vector<64x32xf32>, vector<16x32xf32> -> vector<16x32xf32>
    %c1_117 = arith.constant 1 : index
    %c0_118 = arith.constant 0 : index
    %c0_119 = arith.constant 0 : index
    %299 = vector.load %arg15[%c1_117, %c0_118, %c0_119] : memref<2x1x32xf32, #tpu.memory_space<vmem>>, vector<1x1x32xf32>
    %300 = vector.shape_cast %299 : vector<1x1x32xf32> to vector<1x32xf32>
    %301 = vector.broadcast %300 : vector<1x32xf32> to vector<16x32xf32>
    %302 = arith.addf %298, %301 : vector<16x32xf32>
    %303 = arith.addf %275, %302 : vector<16x32xf32>
    %c1_120 = arith.constant 1 : index
    %c0_121 = arith.constant 0 : index
    %c0_122 = arith.constant 0 : index
    %304 = vector.load %arg16[%c1_120, %c0_121, %c0_122] : memref<2x1x32xf32, #tpu.memory_space<vmem>>, vector<1x1x32xf32>
    %305 = vector.shape_cast %304 : vector<1x1x32xf32> to vector<1x32xf32>
    %c1_123 = arith.constant 1 : index
    %c0_124 = arith.constant 0 : index
    %c0_125 = arith.constant 0 : index
    %306 = vector.load %arg17[%c1_123, %c0_124, %c0_125] : memref<2x1x32xf32, #tpu.memory_space<vmem>>, vector<1x1x32xf32>
    %307 = vector.shape_cast %306 : vector<1x1x32xf32> to vector<1x32xf32>
    %cst_126 = arith.constant dense<0.000000e+00> : vector<16xf32>
    %308 = vector.multi_reduction <add>, %303, %cst_126 [1] : vector<16x32xf32> to vector<16xf32>
    %309 = vector.shape_cast %308 : vector<16xf32> to vector<16x1xf32>
    %cst_127 = arith.constant 3.200000e+01 : f32
    %310 = vector.broadcast %cst_127 : f32 to vector<16x1xf32>
    %311 = arith.divf %309, %310 : vector<16x1xf32>
    %312 = vector.broadcast %311 : vector<16x1xf32> to vector<16x32xf32>
    %313 = arith.subf %303, %312 : vector<16x32xf32>
    %314 = arith.mulf %313, %313 : vector<16x32xf32>
    %cst_128 = arith.constant dense<0.000000e+00> : vector<16xf32>
    %315 = vector.multi_reduction <add>, %314, %cst_128 [1] : vector<16x32xf32> to vector<16xf32>
    %316 = vector.shape_cast %315 : vector<16xf32> to vector<16x1xf32>
    %cst_129 = arith.constant 3.200000e+01 : f32
    %317 = vector.broadcast %cst_129 : f32 to vector<16x1xf32>
    %318 = arith.divf %316, %317 : vector<16x1xf32>
    %319 = vector.broadcast %311 : vector<16x1xf32> to vector<16x32xf32>
    %320 = arith.subf %303, %319 : vector<16x32xf32>
    %cst_130 = arith.constant 9.99999996E-13 : f32
    %321 = vector.broadcast %cst_130 : f32 to vector<16x1xf32>
    %322 = arith.addf %318, %321 : vector<16x1xf32>
    %323 = math.rsqrt %322 : vector<16x1xf32>
    %324 = vector.broadcast %323 : vector<16x1xf32> to vector<16x32xf32>
    %325 = arith.mulf %320, %324 : vector<16x32xf32>
    %326 = vector.broadcast %305 : vector<1x32xf32> to vector<16x32xf32>
    %327 = arith.mulf %325, %326 : vector<16x32xf32>
    %328 = vector.broadcast %307 : vector<1x32xf32> to vector<16x32xf32>
    %329 = arith.addf %327, %328 : vector<16x32xf32>
    %330 = vector.shape_cast %329 : vector<16x32xf32> to vector<2x8x32xf32>
    %331 = vector.extract_strided_slice %330 {offsets = [0, 0, 0], sizes = [2, 1, 32], strides = [1, 1, 1]} : vector<2x8x32xf32> to vector<2x1x32xf32>
    %332 = vector.shape_cast %331 : vector<2x1x32xf32> to vector<2x32xf32>
    %c0_131 = arith.constant 0 : index
    %c0_132 = arith.constant 0 : index
    %333 = vector.load %arg18[%c0_131, %c0_132] : memref<32x3xf32, #tpu.memory_space<vmem>>, vector<32x3xf32>
    %cst_133 = arith.constant dense<0.000000e+00> : vector<2x3xf32>
    %334 = tpu.matmul %332, %333, %cst_133 {dimension_numbers = #tpu.dot_dimension_numbers<[1], [0], [0], [1], [0, 0, 1, 1], [], []>} : vector<2x32xf32>, vector<32x3xf32>, vector<2x3xf32> -> vector<2x3xf32>
    %c0_134 = arith.constant 0 : index
    %c0_135 = arith.constant 0 : index
    %335 = vector.load %arg19[%c0_134, %c0_135] : memref<1x3xf32, #tpu.memory_space<vmem>>, vector<1x3xf32>
    %336 = vector.broadcast %335 : vector<1x3xf32> to vector<2x3xf32>
    %337 = arith.addf %334, %336 : vector<2x3xf32>
    %c0_136 = arith.constant 0 : index
    %c0_137 = arith.constant 0 : index
    %338 = vector.load %arg20[%c0_136, %c0_137] : memref<2x3xf32, #tpu.memory_space<vmem>>, vector<2x3xf32>
    tpu.vector_store %arg20[%c0_136, %c0_137], %337 {strides = array<i32>} : memref<2x3xf32, #tpu.memory_space<vmem>>, vector<2x3xf32>,
    return
  }
}

</mosaic_0001>

<llo_original>
// kernel: bert_for_seq_cls.1
$region0: #{bert_for_seq_cls.1}
  #allocation0 [shape = 'u32[]', space=smem, size = 0x4, offset = 0x4, fixed_abs, tag = 'smem constant byte address 0x4 - core index']
  #allocation1 [shape = 'u32[72,128]{1,0:T(1,128)}', space=vmem, size = 0x9000, scoped, tag = 'internal scratch']
  %s0 = inlined_call_operand.vmem [shape: s32[16,1], index: 0, kind: input, shape index: {}]
  %s1 = inlined_call_operand.vmem [shape: f32[128,32], index: 1, kind: input, shape index: {}]
  %s2 = inlined_call_operand.vmem [shape: f32[8,32], index: 2, kind: input, shape index: {}]
  %s3 = inlined_call_operand.vmem [shape: f32[2,32], index: 3, kind: input, shape index: {}]
  %s4 = inlined_call_operand.vmem [shape: f32[1,32], index: 4, kind: input, shape index: {}]
  %s5 = inlined_call_operand.vmem [shape: f32[1,32], index: 5, kind: input, shape index: {}]
  %s6 = inlined_call_operand.vmem [shape: f32[2,32,96], index: 6, kind: input, shape index: {}]
  %s7 = inlined_call_operand.vmem [shape: f32[2,1,96], index: 7, kind: input, shape index: {}]
  %s8 = inlined_call_operand.vmem [shape: f32[2,32,32], index: 8, kind: input, shape index: {}]
  %s9 = inlined_call_operand.vmem [shape: f32[2,1,32], index: 9, kind: input, shape index: {}]
  %s10 = inlined_call_operand.vmem [shape: f32[2,1,32], index: 10, kind: input, shape index: {}]
  %s11 = inlined_call_operand.vmem [shape: f32[2,1,32], index: 11, kind: input, shape index: {}]
  %s12 = inlined_call_operand.vmem [shape: f32[2,32,64], index: 12, kind: input, shape index: {}]
  %s13 = inlined_call_operand.vmem [shape: f32[2,1,64], index: 13, kind: input, shape index: {}]
  %s14 = inlined_call_operand.vmem [shape: f32[2,64,32], index: 14, kind: input, shape index: {}]
  %s15 = inlined_call_operand.vmem [shape: f32[2,1,32], index: 15, kind: input, shape index: {}]
  %s16 = inlined_call_operand.vmem [shape: f32[2,1,32], index: 16, kind: input, shape index: {}]
  %s17 = inlined_call_operand.vmem [shape: f32[2,1,32], index: 17, kind: input, shape index: {}]
  %s18 = inlined_call_operand.vmem [shape: f32[32,3], index: 18, kind: input, shape index: {}]
  %s19 = inlined_call_operand.vmem [shape: f32[1,3], index: 19, kind: input, shape index: {}]
  %s20 = inlined_call_operand.hbm [shape: f32[2,3], index: 20, kind: output, shape index: {}]
  %s21 = sld [smem:[#allocation0]]
  $region90: #{bert_for_seq_cls.1} parent=0
    _
  %s23 = ssub.s32 1, %s21
  %s24 = scalar_select 0, %s23, %s21
  $region1: #{bert_for_seq_cls.1} parent=0
    #allocation2 [shape = 'u8[1024]{0}', space=vmem, size = 0x400, scoped, tag = 'output window, operand 0, single buffered']
    #allocation3 [shape = 's32[1]{0}', space=sflag, size = 0x4, scoped, tag = 'scoped memory for bert_for_seq_cls.1']
    %25 = vsyncpa [#allocation3], 0
    // Predicated region
    $region2: #{bert_for_seq_cls.1} parent=1 // pred_check
      _
    $region3: #{bert_for_seq_cls.1} parent=1 // pred_check_branch
      %27 = sbr.rel (0) target = $region5
    $region4: #{bert_for_seq_cls.1} parent=1 // pred_region
      _
    $region5: #{bert_for_seq_cls.1} parent=1 // pred_fallthru
      _
    // Predicated region
    $region6: #{bert_for_seq_cls.1} parent=1 // pred_check
      _
    $region7: #{bert_for_seq_cls.1} parent=1 // pred_check_branch
      %29 = sbr.rel (0) target = $region9
    $region8: #{bert_for_seq_cls.1} parent=1 // pred_region
      _
    $region9: #{bert_for_seq_cls.1} parent=1 // pred_fallthru
      _
    // Predicated region
    $region10: #{bert_for_seq_cls.1} parent=1 // pred_check
      _
    $region11: #{bert_for_seq_cls.1} parent=1 // pred_check_branch
      %31 = sbr.rel (0) target = $region13
    $region12: #{bert_for_seq_cls.1} parent=1 // pred_region
      _
    $region13: #{bert_for_seq_cls.1} parent=1 // pred_fallthru
      _
    // Predicated region
    $region14: #{bert_for_seq_cls.1} parent=1 // pred_check
      _
    $region15: #{bert_for_seq_cls.1} parent=1 // pred_check_branch
      %33 = sbr.rel (0) target = $region17
    $region16: #{bert_for_seq_cls.1} parent=1 // pred_region
      _
    $region17: #{bert_for_seq_cls.1} parent=1 // pred_fallthru
      _
    // Predicated region
    $region18: #{bert_for_seq_cls.1} parent=1 // pred_check
      _
    $region19: #{bert_for_seq_cls.1} parent=1 // pred_check_branch
      %35 = sbr.rel (0) target = $region21
    $region20: #{bert_for_seq_cls.1} parent=1 // pred_region
      _
    $region21: #{bert_for_seq_cls.1} parent=1 // pred_fallthru
      _
    // Predicated region
    $region22: #{bert_for_seq_cls.1} parent=1 // pred_check
      _
    $region23: #{bert_for_seq_cls.1} parent=1 // pred_check_branch
      %37 = sbr.rel (0) target = $region25
    $region24: #{bert_for_seq_cls.1} parent=1 // pred_region
      _
    $region25: #{bert_for_seq_cls.1} parent=1 // pred_fallthru
      _
    // Predicated region
    $region26: #{bert_for_seq_cls.1} parent=1 // pred_check
      _
    $region27: #{bert_for_seq_cls.1} parent=1 // pred_check_branch
      %39 = sbr.rel (0) target = $region29
    $region28: #{bert_for_seq_cls.1} parent=1 // pred_region
      _
    $region29: #{bert_for_seq_cls.1} parent=1 // pred_fallthru
      _
    // Predicated region
    $region30: #{bert_for_seq_cls.1} parent=1 // pred_check
      _
    $region31: #{bert_for_seq_cls.1} parent=1 // pred_check_branch
      %41 = sbr.rel (0) target = $region33
    $region32: #{bert_for_seq_cls.1} parent=1 // pred_region
      _
    $region33: #{bert_for_seq_cls.1} parent=1 // pred_fallthru
      _
    // Predicated region
    $region34: #{bert_for_seq_cls.1} parent=1 // pred_check
      _
    $region35: #{bert_for_seq_cls.1} parent=1 // pred_check_branch
      %43 = sbr.rel (0) target = $region37
    $region36: #{bert_for_seq_cls.1} parent=1 // pred_region
      _
    $region37: #{bert_for_seq_cls.1} parent=1 // pred_fallthru
      _
    // Predicated region
    $region38: #{bert_for_seq_cls.1} parent=1 // pred_check
      _
    $region39: #{bert_for_seq_cls.1} parent=1 // pred_check_branch
      %45 = sbr.rel (0) target = $region41
    $region40: #{bert_for_seq_cls.1} parent=1 // pred_region
      _
    $region41: #{bert_for_seq_cls.1} parent=1 // pred_fallthru
      _
    // Predicated region
    $region42: #{bert_for_seq_cls.1} parent=1 // pred_check
      _
    $region43: #{bert_for_seq_cls.1} parent=1 // pred_check_branch
      %47 = sbr.rel (0) target = $region45
    $region44: #{bert_for_seq_cls.1} parent=1 // pred_region
      _
    $region45: #{bert_for_seq_cls.1} parent=1 // pred_fallthru
      _
    // Predicated region
    $region46: #{bert_for_seq_cls.1} parent=1 // pred_check
      _
    $region47: #{bert_for_seq_cls.1} parent=1 // pred_check_branch
      %49 = sbr.rel (0) target = $region49
    $region48: #{bert_for_seq_cls.1} parent=1 // pred_region
      _
    $region49: #{bert_for_seq_cls.1} parent=1 // pred_fallthru
      _
    // Predicated region
    $region50: #{bert_for_seq_cls.1} parent=1 // pred_check
      _
    $region51: #{bert_for_seq_cls.1} parent=1 // pred_check_branch
      %51 = sbr.rel (0) target = $region53
    $region52: #{bert_for_seq_cls.1} parent=1 // pred_region
      _
    $region53: #{bert_for_seq_cls.1} parent=1 // pred_fallthru
      _
    // Predicated region
    $region54: #{bert_for_seq_cls.1} parent=1 // pred_check
      _
    $region55: #{bert_for_seq_cls.1} parent=1 // pred_check_branch
      %53 = sbr.rel (0) target = $region57
    $region56: #{bert_for_seq_cls.1} parent=1 // pred_region
      _
    $region57: #{bert_for_seq_cls.1} parent=1 // pred_fallthru
      _
    // Predicated region
    $region58: #{bert_for_seq_cls.1} parent=1 // pred_check
      _
    $region59: #{bert_for_seq_cls.1} parent=1 // pred_check_branch
      %55 = sbr.rel (0) target = $region61
    $region60: #{bert_for_seq_cls.1} parent=1 // pred_region
      _
    $region61: #{bert_for_seq_cls.1} parent=1 // pred_fallthru
      _
    // Predicated region
    $region62: #{bert_for_seq_cls.1} parent=1 // pred_check
      _
    $region63: #{bert_for_seq_cls.1} parent=1 // pred_check_branch
      %57 = sbr.rel (0) target = $region65
    $region64: #{bert_for_seq_cls.1} parent=1 // pred_region
      _
    $region65: #{bert_for_seq_cls.1} parent=1 // pred_fallthru
      _
    // Predicated region
    $region66: #{bert_for_seq_cls.1} parent=1 // pred_check
      _
    $region67: #{bert_for_seq_cls.1} parent=1 // pred_check_branch
      %59 = sbr.rel (0) target = $region69
    $region68: #{bert_for_seq_cls.1} parent=1 // pred_region
      _
    $region69: #{bert_for_seq_cls.1} parent=1 // pred_fallthru
      _
    // Predicated region
    $region70: #{bert_for_seq_cls.1} parent=1 // pred_check
      _
    $region71: #{bert_for_seq_cls.1} parent=1 // pred_check_branch
      %61 = sbr.rel (0) target = $region73
    $region72: #{bert_for_seq_cls.1} parent=1 // pred_region
      _
    $region73: #{bert_for_seq_cls.1} parent=1 // pred_fallthru
      _
    // Predicated region
    $region74: #{bert_for_seq_cls.1} parent=1 // pred_check
      _
    $region75: #{bert_for_seq_cls.1} parent=1 // pred_check_branch
      %63 = sbr.rel (0) target = $region77
    $region76: #{bert_for_seq_cls.1} parent=1 // pred_region
      _
    $region77: #{bert_for_seq_cls.1} parent=1 // pred_fallthru
      _
    // Predicated region
    $region78: #{bert_for_seq_cls.1} parent=1 // pred_check
      _
    $region79: #{bert_for_seq_cls.1} parent=1 // pred_check_branch
      %65 = sbr.rel (0) target = $region81
    $region80: #{bert_for_seq_cls.1} parent=1 // pred_region
      _
    $region81: #{bert_for_seq_cls.1} parent=1 // pred_fallthru
      _
    %v66 = vld [vmem:[%s0] sm:$0xff]
    %v67 = vld [vmem:[%s0 + $0x8] sm:$0xff]
    %v68 = vlaneseq
    %v69 = vand.u32 %v68, 127
    %70 = vset.pattern.permute.xlu0 0
    %71 = vperm.xlu0 %70, %v66
    %v72 = vpop.permute.xlu0 %71
    %73 = vset.pattern.permute.xlu0 0
    %74 = vperm.xlu0 %73, %v67
    %v75 = vpop.permute.xlu0 %74
    %vm76 = vcmp.eq.s32.totalorder %v72, %v69
    %vm77 = vcmp.eq.s32.totalorder %v75, %v69
    %v78 = vsel %vm76, 1, 0
    %v79 = vsel %vm77, 1, 0
    %v80 = vcvt.s32.f32 %v78
    %v81 = vcvt.s32.f32 %v79
    %v82 = vld [vmem:[%s1] sm:$0xff]
    %v83 = vld [vmem:[%s1 + $0x8] sm:$0xff]
    %v84 = vld [vmem:[%s1 + $0x10] sm:$0xff]
    %v85 = vld [vmem:[%s1 + $0x18] sm:$0xff]
    %v86 = vld [vmem:[%s1 + $0x20] sm:$0xff]
    %v87 = vld [vmem:[%s1 + $0x28] sm:$0xff]
    %v88 = vld [vmem:[%s1 + $0x30] sm:$0xff]
    %v89 = vld [vmem:[%s1 + $0x38] sm:$0xff]
    %v90 = vld [vmem:[%s1 + $0x40] sm:$0xff]
    %v91 = vld [vmem:[%s1 + $0x48] sm:$0xff]
    %v92 = vld [vmem:[%s1 + $0x50] sm:$0xff]
    %v93 = vld [vmem:[%s1 + $0x58] sm:$0xff]
    %v94 = vld [vmem:[%s1 + $0x60] sm:$0xff]
    %v95 = vld [vmem:[%s1 + $0x68] sm:$0xff]
    %v96 = vld [vmem:[%s1 + $0x70] sm:$0xff]
    %v97 = vld [vmem:[%s1 + $0x78] sm:$0xff]
    %v98 = vld [vmem:[%s2] sm:$0xff]
    %99 = vmatpush.msra.mxu0 %v97
    %100 = vmatpush.msra.mxu0 %v96
    %101 = vmatpush.msra.mxu0 %v95
    %102 = vmatpush.msra.mxu0 %v94
    %103 = vmatpush.msra.mxu0 %v93
    %104 = vmatpush.msra.mxu0 %v92
    %105 = vmatpush.msra.mxu0 %v91
    %106 = vmatpush.msra.mxu0 %v90
    %107 = vmatpush.msra.mxu0 %v89
    %108 = vmatpush.msra.mxu0 %v88
    %109 = vmatpush.msra.mxu0 %v87
    %110 = vmatpush.msra.mxu0 %v86
    %111 = vmatpush.msra.mxu0 %v85
    %112 = vmatpush.msra.mxu0 %v84
    %113 = vmatpush.msra.mxu0 %v83
    %114 = vmatpush.msra.mxu0 %v82
    %115 = vmatmul.f32.gmra.mxu0 %v80
    %v116 = vpop.f32.mrf.mxu0
    %v117 = vadd.f32 %v98, %v116
    %118 = vmatmul.f32.gmra.mxu0 %v81
    %v119 = vpop.f32.mrf.mxu0
    %v120 = vadd.f32 %v98, %v119
    %121 = vdwg.mxu0
    %v122 = vld [vmem:[%s3] sm:$0x1]
    %v123 = vperm.slane %v122, 0
    %v124 = vadd.f32 %v117, %v123
    %v125 = vadd.f32 %v120, %v123
    %v126 = vld [vmem:[%s4] sm:$0x1]
    %v127 = vld [vmem:[%s5] sm:$0x1]
    %vm128 = vcmask 261120
    %v129 = vsel %vm128, %v124, 0.0
    %130 = vadd.xlane.f32.xlu0 %v129
    %v131 = vpop.xlane.xlu0 %130
    %v132 = vsel %vm128, %v125, 0.0
    %133 = vadd.xlane.f32.xlu0 %v132
    %v134 = vpop.xlane.xlu0 %133
    %v135 = vrcp.pop 32.0
    %v136 = vmul.f32 32.0, %v135
    %v137 = vsub.f32 1.0, %v136
    %v138 = vmul.f32 %v135, %v137
    %v139 = vadd.f32 %v135, %v138
    %vm140 = vweird.f32 %v135
    %v141 = vsel %vm140, %v135, %v139
    %v142 = vmul.f32 %v131, %v141
    %v143 = vmul.f32 %v134, %v141
    %v144 = vsub.f32 %v124, %v142
    %v145 = vsub.f32 %v125, %v143
    %v146 = vmul.f32 %v144, %v144
    %v147 = vmul.f32 %v145, %v145
    %v148 = vsel %vm128, %v146, 0.0
    %149 = vadd.xlane.f32.xlu0 %v148
    %v150 = vpop.xlane.xlu0 %149
    %v151 = vsel %vm128, %v147, 0.0
    %152 = vadd.xlane.f32.xlu0 %v151
    %v153 = vpop.xlane.xlu0 %152
    %v154 = vmul.f32 %v150, %v141
    %v155 = vmul.f32 %v153, %v141
    %v156 = vadd.f32 %v154, 1e-12
    %v157 = vadd.f32 %v155, 1e-12
    %v158 = vrsqrt.pop %v156
    %v159 = vmul.f32 %v158, %v156
    %v160 = vmul.f32 %v159, %v158
    %v161 = vmul.f32 0.5, %v160
    %v162 = vsub.f32 1.5, %v161
    %v163 = vmul.f32 %v158, %v162
    %vm164 = vweird.f32 %v156
    %vm165 = vweird.f32 %v158
    %vm166 = vmor %vm164, %vm165
    %v167 = vsel %vm166, %v158, %v163
    %v168 = vrsqrt.pop %v157
    %v169 = vmul.f32 %v168, %v157
    %v170 = vmul.f32 %v169, %v168
    %v171 = vmul.f32 0.5, %v170
    %v172 = vsub.f32 1.5, %v171
    %v173 = vmul.f32 %v168, %v172
    %vm174 = vweird.f32 %v157
    %vm175 = vweird.f32 %v168
    %vm176 = vmor %vm174, %vm175
    %v177 = vsel %vm176, %v168, %v173
    %v178 = vmul.f32 %v144, %v167
    %v179 = vmul.f32 %v145, %v177
    %v181 = vperm.slane %v126, 0
    %v183 = vmul.f32 %v178, %v181
    %v184 = vmul.f32 %v179, %v181
    %v186 = vperm.slane %v127, 0
    %v188 = vadd.f32 %v183, %v186
    %v189 = vadd.f32 %v184, %v186
    %v190 = vld [vmem:[%s6] sm:$0xff]
    %v191 = vld [vmem:[%s6 + $0x8] sm:$0xff]
    %v192 = vld [vmem:[%s6 + $0x10] sm:$0xff]
    %v193 = vld [vmem:[%s6 + $0x18] sm:$0xff]
    %v194 = vld [vmem:[%s7] sm:$0x1]
    %v196 = vperm.slane %v194, 0
    %v199 = vsel %vm128, %v188, 0
    %v202 = vsel %vm128, %v189, 0
    %204 = vmatpush.msra.mxu0 0.0
    %205 = vmatpush.msra.mxu0 0.0
    %206 = vmatpush.msra.mxu0 0.0
    %207 = vmatpush.msra.mxu0 0.0
    %208 = vmatpush.msra.mxu0 0.0
    %209 = vmatpush.msra.mxu0 0.0
    %210 = vmatpush.msra.mxu0 0.0
    %211 = vmatpush.msra.mxu0 0.0
    %212 = vmatpush.msra.mxu0 0.0
    %213 = vmatpush.msra.mxu0 0.0
    %214 = vmatpush.msra.mxu0 0.0
    %215 = vmatpush.msra.mxu0 0.0
    %216 = vmatpush.msra.mxu0 %v193
    %217 = vmatpush.msra.mxu0 %v192
    %218 = vmatpush.msra.mxu0 %v191
    %219 = vmatpush.msra.mxu0 %v190
    %220 = vmatmul.f32.gmra.mxu0 %v199
    %v221 = vpop.f32.mrf.mxu0
    %v222 = vadd.f32 %v196, %v221
    %223 = vmatmul.f32.gmra.mxu0 %v202
    %v224 = vpop.f32.mrf.mxu0
    %v225 = vadd.f32 %v196, %v224
    %226 = vdwg.mxu0
    %229 = vrot.lane.b32.xlu0 %v222, 120
    %v230 = vpop.permute.xlu0 %229
    %231 = vrot.lane.b32.xlu0 %v225, 120
    %v232 = vpop.permute.xlu0 %231
    %233 = vrot.lane.b32.xlu0 %v222, 112
    %v234 = vpop.permute.xlu0 %233
    %235 = vrot.lane.b32.xlu0 %v225, 112
    %v236 = vpop.permute.xlu0 %235
    %237 = vrot.lane.b32.xlu0 %v222, 104
    %v238 = vpop.permute.xlu0 %237
    %239 = vrot.lane.b32.xlu0 %v225, 104
    %v240 = vpop.permute.xlu0 %239
    %241 = vrot.lane.b32.xlu0 %v222, 96
    %v242 = vpop.permute.xlu0 %241
    %vm243 = vcmask 64512
    %v244 = vsel %vm243, %v222, 0
    %v246 = vsel %vm243, %v242, 0
    %248 = vmatpush.xpose.msra.mxu0 0.0
    %249 = vmatpush.xpose.msra.mxu0 0.0
    %250 = vmatpush.xpose.msra.mxu0 0.0
    %251 = vmatpush.xpose.msra.mxu0 0.0
    %252 = vmatpush.xpose.msra.mxu0 0.0
    %253 = vmatpush.xpose.msra.mxu0 0.0
    %254 = vmatpush.xpose.msra.mxu0 0.0
    %255 = vmatpush.xpose.msra.mxu0 0.0
    %256 = vmatpush.xpose.msra.mxu0 0.0
    %257 = vmatpush.xpose.msra.mxu0 0.0
    %258 = vmatpush.xpose.msra.mxu0 0.0
    %259 = vmatpush.xpose.msra.mxu0 0.0
    %260 = vmatpush.xpose.msra.mxu0 0.0
    %261 = vmatpush.xpose.msra.mxu0 0.0
    %262 = vmatpush.xpose.msra.mxu0 0.0
    %263 = vmatpush.xpose.msra.mxu0 %v246
    %264 = vmatmul.f32.gmra.mxu0 %v244
    %v265 = vpop.f32.mrf.mxu0
    %v266 = vadd.f32 0.0, %v265
    %267 = vdwg.mxu0
    %268 = vrot.lane.b32.xlu0 %v225, 96
    %v269 = vpop.permute.xlu0 %268
    %v270 = vsel %vm243, %v225, 0
    %v272 = vsel %vm243, %v269, 0
    %274 = vmatpush.xpose.msra.mxu0 0.0
    %275 = vmatpush.xpose.msra.mxu0 0.0
    %276 = vmatpush.xpose.msra.mxu0 0.0
    %277 = vmatpush.xpose.msra.mxu0 0.0
    %278 = vmatpush.xpose.msra.mxu0 0.0
    %279 = vmatpush.xpose.msra.mxu0 0.0
    %280 = vmatpush.xpose.msra.mxu0 0.0
    %281 = vmatpush.xpose.msra.mxu0 0.0
    %282 = vmatpush.xpose.msra.mxu0 0.0
    %283 = vmatpush.xpose.msra.mxu0 0.0
    %284 = vmatpush.xpose.msra.mxu0 0.0
    %285 = vmatpush.xpose.msra.mxu0 0.0
    %286 = vmatpush.xpose.msra.mxu0 0.0
    %287 = vmatpush.xpose.msra.mxu0 0.0
    %288 = vmatpush.xpose.msra.mxu0 0.0
    %289 = vmatpush.xpose.msra.mxu0 %v272
    %290 = vmatmul.f32.gmra.mxu0 %v270
    %v291 = vpop.f32.mrf.mxu0
    %v292 = vadd.f32 0.0, %v291
    %293 = vdwg.mxu0
    %294 = vrot.lane.b32.xlu0 %v230, 96
    %v295 = vpop.permute.xlu0 %294
    %v296 = vsel %vm243, %v230, 0
    %v298 = vsel %vm243, %v295, 0
    %300 = vmatpush.xpose.msra.mxu0 0.0
    %301 = vmatpush.xpose.msra.mxu0 0.0
    %302 = vmatpush.xpose.msra.mxu0 0.0
    %303 = vmatpush.xpose.msra.mxu0 0.0
    %304 = vmatpush.xpose.msra.mxu0 0.0
    %305 = vmatpush.xpose.msra.mxu0 0.0
    %306 = vmatpush.xpose.msra.mxu0 0.0
    %307 = vmatpush.xpose.msra.mxu0 0.0
    %308 = vmatpush.xpose.msra.mxu0 0.0
    %309 = vmatpush.xpose.msra.mxu0 0.0
    %310 = vmatpush.xpose.msra.mxu0 0.0
    %311 = vmatpush.xpose.msra.mxu0 0.0
    %312 = vmatpush.xpose.msra.mxu0 0.0
    %313 = vmatpush.xpose.msra.mxu0 0.0
    %314 = vmatpush.xpose.msra.mxu0 0.0
    %315 = vmatpush.xpose.msra.mxu0 %v298
    %316 = vmatmul.f32.gmra.mxu0 %v296
    %v317 = vpop.f32.mrf.mxu0
    %v318 = vadd.f32 0.0, %v317
    %319 = vdwg.mxu0
    %320 = vrot.lane.b32.xlu0 %v232, 96
    %v321 = vpop.permute.xlu0 %320
    %v322 = vsel %vm243, %v232, 0
    %v324 = vsel %vm243, %v321, 0
    %326 = vmatpush.xpose.msra.mxu0 0.0
    %327 = vmatpush.xpose.msra.mxu0 0.0
    %328 = vmatpush.xpose.msra.mxu0 0.0
    %329 = vmatpush.xpose.msra.mxu0 0.0
    %330 = vmatpush.xpose.msra.mxu0 0.0
    %331 = vmatpush.xpose.msra.mxu0 0.0
    %332 = vmatpush.xpose.msra.mxu0 0.0
    %333 = vmatpush.xpose.msra.mxu0 0.0
    %334 = vmatpush.xpose.msra.mxu0 0.0
    %335 = vmatpush.xpose.msra.mxu0 0.0
    %336 = vmatpush.xpose.msra.mxu0 0.0
    %337 = vmatpush.xpose.msra.mxu0 0.0
    %338 = vmatpush.xpose.msra.mxu0 0.0
    %339 = vmatpush.xpose.msra.mxu0 0.0
    %340 = vmatpush.xpose.msra.mxu0 0.0
    %341 = vmatpush.xpose.msra.mxu0 %v324
    %342 = vmatmul.f32.gmra.mxu0 %v322
    %v343 = vpop.f32.mrf.mxu0
    %v344 = vadd.f32 0.0, %v343
    %345 = vdwg.mxu0
    %346 = vrot.lane.b32.xlu0 %v234, 96
    %v347 = vpop.permute.xlu0 %346
    %v348 = vsel %vm243, %v234, 0
    %v350 = vsel %vm243, %v347, 0
    %352 = vmatpush.xpose.msra.mxu0 0.0
    %353 = vmatpush.xpose.msra.mxu0 0.0
    %354 = vmatpush.xpose.msra.mxu0 0.0
    %355 = vmatpush.xpose.msra.mxu0 0.0
    %356 = vmatpush.xpose.msra.mxu0 0.0
    %357 = vmatpush.xpose.msra.mxu0 0.0
    %358 = vmatpush.xpose.msra.mxu0 0.0
    %359 = vmatpush.xpose.msra.mxu0 0.0
    %360 = vmatpush.xpose.msra.mxu0 0.0
    %361 = vmatpush.xpose.msra.mxu0 0.0
    %362 = vmatpush.xpose.msra.mxu0 0.0
    %363 = vmatpush.xpose.msra.mxu0 0.0
    %364 = vmatpush.xpose.msra.mxu0 0.0
    %365 = vmatpush.xpose.msra.mxu0 0.0
    %366 = vmatpush.xpose.msra.mxu0 0.0
    %367 = vmatpush.xpose.msra.mxu0 %v350
    %368 = vmatmul.f32.gmra.mxu0 %v348
    %v369 = vpop.f32.mrf.mxu0
    %v370 = vadd.f32 0.0, %v369
    %371 = vdwg.mxu0
    %372 = vrot.lane.b32.xlu0 %v236, 96
    %v373 = vpop.permute.xlu0 %372
    %v374 = vsel %vm243, %v236, 0
    %v376 = vsel %vm243, %v373, 0
    %378 = vmatpush.xpose.msra.mxu0 0.0
    %379 = vmatpush.xpose.msra.mxu0 0.0
    %380 = vmatpush.xpose.msra.mxu0 0.0
    %381 = vmatpush.xpose.msra.mxu0 0.0
    %382 = vmatpush.xpose.msra.mxu0 0.0
    %383 = vmatpush.xpose.msra.mxu0 0.0
    %384 = vmatpush.xpose.msra.mxu0 0.0
    %385 = vmatpush.xpose.msra.mxu0 0.0
    %386 = vmatpush.xpose.msra.mxu0 0.0
    %387 = vmatpush.xpose.msra.mxu0 0.0
    %388 = vmatpush.xpose.msra.mxu0 0.0
    %389 = vmatpush.xpose.msra.mxu0 0.0
    %390 = vmatpush.xpose.msra.mxu0 0.0
    %391 = vmatpush.xpose.msra.mxu0 0.0
    %392 = vmatpush.xpose.msra.mxu0 0.0
    %393 = vmatpush.xpose.msra.mxu0 %v376
    %394 = vmatmul.f32.gmra.mxu0 %v374
    %v395 = vpop.f32.mrf.mxu0
    %v396 = vadd.f32 0.0, %v395
    %397 = vdwg.mxu0
    %398 = vrot.lane.b32.xlu0 %v238, 96
    %v399 = vpop.permute.xlu0 %398
    %v400 = vsel %vm243, %v238, 0
    %v402 = vsel %vm243, %v399, 0
    %404 = vmatpush.xpose.msra.mxu0 0.0
    %405 = vmatpush.xpose.msra.mxu0 0.0
    %406 = vmatpush.xpose.msra.mxu0 0.0
    %407 = vmatpush.xpose.msra.mxu0 0.0
    %408 = vmatpush.xpose.msra.mxu0 0.0
    %409 = vmatpush.xpose.msra.mxu0 0.0
    %410 = vmatpush.xpose.msra.mxu0 0.0
    %411 = vmatpush.xpose.msra.mxu0 0.0
    %412 = vmatpush.xpose.msra.mxu0 0.0
    %413 = vmatpush.xpose.msra.mxu0 0.0
    %414 = vmatpush.xpose.msra.mxu0 0.0
    %415 = vmatpush.xpose.msra.mxu0 0.0
    %416 = vmatpush.xpose.msra.mxu0 0.0
    %417 = vmatpush.xpose.msra.mxu0 0.0
    %418 = vmatpush.xpose.msra.mxu0 0.0
    %419 = vmatpush.xpose.msra.mxu0 %v402
    %420 = vmatmul.f32.gmra.mxu0 %v400
    %v421 = vpop.f32.mrf.mxu0
    %v422 = vadd.f32 0.0, %v421
    %423 = vdwg.mxu0
    %424 = vrot.lane.b32.xlu0 %v240, 96
    %v425 = vpop.permute.xlu0 %424
    %v426 = vsel %vm243, %v240, 0
    %v428 = vsel %vm243, %v425, 0
    %430 = vmatpush.xpose.msra.mxu0 0.0
    %431 = vmatpush.xpose.msra.mxu0 0.0
    %432 = vmatpush.xpose.msra.mxu0 0.0
    %433 = vmatpush.xpose.msra.mxu0 0.0
    %434 = vmatpush.xpose.msra.mxu0 0.0
    %435 = vmatpush.xpose.msra.mxu0 0.0
    %436 = vmatpush.xpose.msra.mxu0 0.0
    %437 = vmatpush.xpose.msra.mxu0 0.0
    %438 = vmatpush.xpose.msra.mxu0 0.0
    %439 = vmatpush.xpose.msra.mxu0 0.0
    %440 = vmatpush.xpose.msra.mxu0 0.0
    %441 = vmatpush.xpose.msra.mxu0 0.0
    %442 = vmatpush.xpose.msra.mxu0 0.0
    %443 = vmatpush.xpose.msra.mxu0 0.0
    %444 = vmatpush.xpose.msra.mxu0 0.0
    %445 = vmatpush.xpose.msra.mxu0 %v428
    %446 = vmatmul.f32.gmra.mxu0 %v426
    %v447 = vpop.f32.mrf.mxu0
    %v448 = vadd.f32 0.0, %v447
    %449 = vdwg.mxu0
    %v450 = vsel %vm243, %v266, -inf
    %451 = vmax.xlane.f32.xlu0 %v450
    %v452 = vpop.xlane.xlu0 %451
    %v453 = vsel %vm243, %v292, -inf
    %454 = vmax.xlane.f32.xlu0 %v453
    %v455 = vpop.xlane.xlu0 %454
    %v456 = vsel %vm243, %v318, -inf
    %457 = vmax.xlane.f32.xlu0 %v456
    %v458 = vpop.xlane.xlu0 %457
    %v459 = vsel %vm243, %v344, -inf
    %460 = vmax.xlane.f32.xlu0 %v459
    %v461 = vpop.xlane.xlu0 %460
    %v462 = vsel %vm243, %v370, -inf
    %463 = vmax.xlane.f32.xlu0 %v462
    %v464 = vpop.xlane.xlu0 %463
    %v465 = vsel %vm243, %v396, -inf
    %466 = vmax.xlane.f32.xlu0 %v465
    %v467 = vpop.xlane.xlu0 %466
    %v468 = vsel %vm243, %v422, -inf
    %469 = vmax.xlane.f32.xlu0 %v468
    %v470 = vpop.xlane.xlu0 %469
    %v471 = vsel %vm243, %v448, -inf
    %472 = vmax.xlane.f32.xlu0 %v471
    %v473 = vpop.xlane.xlu0 %472
    %v474 = vsub.f32 %v266, %v452
    %v475 = vsub.f32 %v292, %v455
    %v476 = vsub.f32 %v318, %v458
    %v477 = vsub.f32 %v344, %v461
    %v478 = vsub.f32 %v370, %v464
    %v479 = vsub.f32 %v396, %v467
    %v480 = vsub.f32 %v422, %v470
    %v481 = vsub.f32 %v448, %v473
    %v482 = vmul.f32 %v474, 1.442695
    %v483 = vpow.pop %v482
    %v484 = vmul.f32 %v475, 1.442695
    %v485 = vpow.pop %v484
    %v486 = vmul.f32 %v476, 1.442695
    %v487 = vpow.pop %v486
    %v488 = vmul.f32 %v477, 1.442695
    %v489 = vpow.pop %v488
    %v490 = vmul.f32 %v478, 1.442695
    %v491 = vpow.pop %v490
    %v492 = vmul.f32 %v479, 1.442695
    %v493 = vpow.pop %v492
    %v494 = vmul.f32 %v480, 1.442695
    %v495 = vpow.pop %v494
    %v496 = vmul.f32 %v481, 1.442695
    %v497 = vpow.pop %v496
    %v498 = vsel %vm243, %v483, 0.0
    %499 = vadd.xlane.f32.xlu0 %v498
    %v500 = vpop.xlane.xlu0 %499
    %v501 = vsel %vm243, %v485, 0.0
    %502 = vadd.xlane.f32.xlu0 %v501
    %v503 = vpop.xlane.xlu0 %502
    %v504 = vsel %vm243, %v487, 0.0
    %505 = vadd.xlane.f32.xlu0 %v504
    %v506 = vpop.xlane.xlu0 %505
    %v507 = vsel %vm243, %v489, 0.0
    %508 = vadd.xlane.f32.xlu0 %v507
    %v509 = vpop.xlane.xlu0 %508
    %v510 = vsel %vm243, %v491, 0.0
    %511 = vadd.xlane.f32.xlu0 %v510
    %v512 = vpop.xlane.xlu0 %511
    %v513 = vsel %vm243, %v493, 0.0
    %514 = vadd.xlane.f32.xlu0 %v513
    %v515 = vpop.xlane.xlu0 %514
    %v516 = vsel %vm243, %v495, 0.0
    %517 = vadd.xlane.f32.xlu0 %v516
    %v518 = vpop.xlane.xlu0 %517
    %v519 = vsel %vm243, %v497, 0.0
    %520 = vadd.xlane.f32.xlu0 %v519
    %v521 = vpop.xlane.xlu0 %520
    %v522 = vrcp.pop %v500
    %v523 = vmul.f32 %v500, %v522
    %v524 = vsub.f32 1.0, %v523
    %v525 = vmul.f32 %v522, %v524
    %v526 = vadd.f32 %v522, %v525
    %vm527 = vweird.f32 %v500
    %vm528 = vweird.f32 %v522
    %vm529 = vmor %vm527, %vm528
    %v530 = vsel %vm529, %v522, %v526
    %v531 = vand.u32 2147483647, %v500
    %vm532 = vcmp.eq.f32.partialorder %v531, 8.507059e+37
    %v533 = vand.u32 %v500, 2147483648
    %v534 = vor.u32 1.1754944e-38, %v533
    %v535 = vsel %vm532, %v534, %v530
    %v536 = vmul.f32 %v483, %v535
    %v537 = vrcp.pop %v503
    %v538 = vmul.f32 %v503, %v537
    %v539 = vsub.f32 1.0, %v538
    %v540 = vmul.f32 %v537, %v539
    %v541 = vadd.f32 %v537, %v540
    %vm542 = vweird.f32 %v503
    %vm543 = vweird.f32 %v537
    %vm544 = vmor %vm542, %vm543
    %v545 = vsel %vm544, %v537, %v541
    %v546 = vand.u32 2147483647, %v503
    %vm547 = vcmp.eq.f32.partialorder %v546, 8.507059e+37
    %v548 = vand.u32 %v503, 2147483648
    %v549 = vor.u32 1.1754944e-38, %v548
    %v550 = vsel %vm547, %v549, %v545
    %v551 = vmul.f32 %v485, %v550
    %v552 = vrcp.pop %v506
    %v553 = vmul.f32 %v506, %v552
    %v554 = vsub.f32 1.0, %v553
    %v555 = vmul.f32 %v552, %v554
    %v556 = vadd.f32 %v552, %v555
    %vm557 = vweird.f32 %v506
    %vm558 = vweird.f32 %v552
    %vm559 = vmor %vm557, %vm558
    %v560 = vsel %vm559, %v552, %v556
    %v561 = vand.u32 2147483647, %v506
    %vm562 = vcmp.eq.f32.partialorder %v561, 8.507059e+37
    %v563 = vand.u32 %v506, 2147483648
    %v564 = vor.u32 1.1754944e-38, %v563
    %v565 = vsel %vm562, %v564, %v560
    %v566 = vmul.f32 %v487, %v565
    %v567 = vrcp.pop %v509
    %v568 = vmul.f32 %v509, %v567
    %v569 = vsub.f32 1.0, %v568
    %v570 = vmul.f32 %v567, %v569
    %v571 = vadd.f32 %v567, %v570
    %vm572 = vweird.f32 %v509
    %vm573 = vweird.f32 %v567
    %vm574 = vmor %vm572, %vm573
    %v575 = vsel %vm574, %v567, %v571
    %v576 = vand.u32 2147483647, %v509
    %vm577 = vcmp.eq.f32.partialorder %v576, 8.507059e+37
    %v578 = vand.u32 %v509, 2147483648
    %v579 = vor.u32 1.1754944e-38, %v578
    %v580 = vsel %vm577, %v579, %v575
    %v581 = vmul.f32 %v489, %v580
    %v582 = vrcp.pop %v512
    %v583 = vmul.f32 %v512, %v582
    %v584 = vsub.f32 1.0, %v583
    %v585 = vmul.f32 %v582, %v584
    %v586 = vadd.f32 %v582, %v585
    %vm587 = vweird.f32 %v512
    %vm588 = vweird.f32 %v582
    %vm589 = vmor %vm587, %vm588
    %v590 = vsel %vm589, %v582, %v586
    %v591 = vand.u32 2147483647, %v512
    %vm592 = vcmp.eq.f32.partialorder %v591, 8.507059e+37
    %v593 = vand.u32 %v512, 2147483648
    %v594 = vor.u32 1.1754944e-38, %v593
    %v595 = vsel %vm592, %v594, %v590
    %v596 = vmul.f32 %v491, %v595
    %v597 = vrcp.pop %v515
    %v598 = vmul.f32 %v515, %v597
    %v599 = vsub.f32 1.0, %v598
    %v600 = vmul.f32 %v597, %v599
    %v601 = vadd.f32 %v597, %v600
    %vm602 = vweird.f32 %v515
    %vm603 = vweird.f32 %v597
    %vm604 = vmor %vm602, %vm603
    %v605 = vsel %vm604, %v597, %v601
    %v606 = vand.u32 2147483647, %v515
    %vm607 = vcmp.eq.f32.partialorder %v606, 8.507059e+37
    %v608 = vand.u32 %v515, 2147483648
    %v609 = vor.u32 1.1754944e-38, %v608
    %v610 = vsel %vm607, %v609, %v605
    %v611 = vmul.f32 %v493, %v610
    %v612 = vrcp.pop %v518
    %v613 = vmul.f32 %v518, %v612
    %v614 = vsub.f32 1.0, %v613
    %v615 = vmul.f32 %v612, %v614
    %v616 = vadd.f32 %v612, %v615
    %vm617 = vweird.f32 %v518
    %vm618 = vweird.f32 %v612
    %vm619 = vmor %vm617, %vm618
    %v620 = vsel %vm619, %v612, %v616
    %v621 = vand.u32 2147483647, %v518
    %vm622 = vcmp.eq.f32.partialorder %v621, 8.507059e+37
    %v623 = vand.u32 %v518, 2147483648
    %v624 = vor.u32 1.1754944e-38, %v623
    %v625 = vsel %vm622, %v624, %v620
    %v626 = vmul.f32 %v495, %v625
    %v627 = vrcp.pop %v521
    %v628 = vmul.f32 %v521, %v627
    %v629 = vsub.f32 1.0, %v628
    %v630 = vmul.f32 %v627, %v629
    %v631 = vadd.f32 %v627, %v630
    %vm632 = vweird.f32 %v521
    %vm633 = vweird.f32 %v627
    %vm634 = vmor %vm632, %vm633
    %v635 = vsel %vm634, %v627, %v631
    %v636 = vand.u32 2147483647, %v521
    %vm637 = vcmp.eq.f32.partialorder %v636, 8.507059e+37
    %v638 = vand.u32 %v521, 2147483648
    %v639 = vor.u32 1.1754944e-38, %v638
    %v640 = vsel %vm637, %v639, %v635
    %v641 = vmul.f32 %v497, %v640
    %642 = vrot.lane.b32.xlu0 %v222, 64
    %v643 = vpop.permute.xlu0 %642
    %v646 = vsel %vm243, %v536, 0
    %648 = vmatpush.msra.mxu0 0.0
    %649 = vmatpush.msra.mxu0 0.0
    %650 = vmatpush.msra.mxu0 0.0
    %651 = vmatpush.msra.mxu0 0.0
    %652 = vmatpush.msra.mxu0 0.0
    %653 = vmatpush.msra.mxu0 0.0
    %654 = vmatpush.msra.mxu0 0.0
    %655 = vmatpush.msra.mxu0 0.0
    %656 = vmatpush.msra.mxu0 0.0
    %657 = vmatpush.msra.mxu0 0.0
    %658 = vmatpush.msra.mxu0 0.0
    %659 = vmatpush.msra.mxu0 0.0
    %660 = vmatpush.msra.mxu0 0.0
    %661 = vmatpush.msra.mxu0 0.0
    %662 = vmatpush.msra.mxu0 0.0
    %663 = vmatpush.msra.mxu0 %v643
    %664 = vmatmul.f32.gmra.mxu0 %v646
    %v665 = vpop.f32.mrf.mxu0
    %v666 = vadd.f32 0.0, %v665
    %667 = vdwg.mxu0
    %668 = vrot.lane.b32.xlu0 %v225, 64
    %v669 = vpop.permute.xlu0 %668
    %v672 = vsel %vm243, %v551, 0
    %674 = vmatpush.msra.mxu0 0.0
    %675 = vmatpush.msra.mxu0 0.0
    %676 = vmatpush.msra.mxu0 0.0
    %677 = vmatpush.msra.mxu0 0.0
    %678 = vmatpush.msra.mxu0 0.0
    %679 = vmatpush.msra.mxu0 0.0
    %680 = vmatpush.msra.mxu0 0.0
    %681 = vmatpush.msra.mxu0 0.0
    %682 = vmatpush.msra.mxu0 0.0
    %683 = vmatpush.msra.mxu0 0.0
    %684 = vmatpush.msra.mxu0 0.0
    %685 = vmatpush.msra.mxu0 0.0
    %686 = vmatpush.msra.mxu0 0.0
    %687 = vmatpush.msra.mxu0 0.0
    %688 = vmatpush.msra.mxu0 0.0
    %689 = vmatpush.msra.mxu0 %v669
    %690 = vmatmul.f32.gmra.mxu0 %v672
    %v691 = vpop.f32.mrf.mxu0
    %v692 = vadd.f32 0.0, %v691
    %693 = vdwg.mxu0
    %694 = vrot.lane.b32.xlu0 %v230, 64
    %v695 = vpop.permute.xlu0 %694
    %v698 = vsel %vm243, %v566, 0
    %700 = vmatpush.msra.mxu0 0.0
    %701 = vmatpush.msra.mxu0 0.0
    %702 = vmatpush.msra.mxu0 0.0
    %703 = vmatpush.msra.mxu0 0.0
    %704 = vmatpush.msra.mxu0 0.0
    %705 = vmatpush.msra.mxu0 0.0
    %706 = vmatpush.msra.mxu0 0.0
    %707 = vmatpush.msra.mxu0 0.0
    %708 = vmatpush.msra.mxu0 0.0
    %709 = vmatpush.msra.mxu0 0.0
    %710 = vmatpush.msra.mxu0 0.0
    %711 = vmatpush.msra.mxu0 0.0
    %712 = vmatpush.msra.mxu0 0.0
    %713 = vmatpush.msra.mxu0 0.0
    %714 = vmatpush.msra.mxu0 0.0
    %715 = vmatpush.msra.mxu0 %v695
    %716 = vmatmul.f32.gmra.mxu0 %v698
    %v717 = vpop.f32.mrf.mxu0
    %v718 = vadd.f32 0.0, %v717
    %719 = vdwg.mxu0
    %720 = vrot.lane.b32.xlu0 %v232, 64
    %v721 = vpop.permute.xlu0 %720
    %v724 = vsel %vm243, %v581, 0
    %726 = vmatpush.msra.mxu0 0.0
    %727 = vmatpush.msra.mxu0 0.0
    %728 = vmatpush.msra.mxu0 0.0
    %729 = vmatpush.msra.mxu0 0.0
    %730 = vmatpush.msra.mxu0 0.0
    %731 = vmatpush.msra.mxu0 0.0
    %732 = vmatpush.msra.mxu0 0.0
    %733 = vmatpush.msra.mxu0 0.0
    %734 = vmatpush.msra.mxu0 0.0
    %735 = vmatpush.msra.mxu0 0.0
    %736 = vmatpush.msra.mxu0 0.0
    %737 = vmatpush.msra.mxu0 0.0
    %738 = vmatpush.msra.mxu0 0.0
    %739 = vmatpush.msra.mxu0 0.0
    %740 = vmatpush.msra.mxu0 0.0
    %741 = vmatpush.msra.mxu0 %v721
    %742 = vmatmul.f32.gmra.mxu0 %v724
    %v743 = vpop.f32.mrf.mxu0
    %v744 = vadd.f32 0.0, %v743
    %745 = vdwg.mxu0
    %746 = vrot.lane.b32.xlu0 %v234, 64
    %v747 = vpop.permute.xlu0 %746
    %v750 = vsel %vm243, %v596, 0
    %752 = vmatpush.msra.mxu0 0.0
    %753 = vmatpush.msra.mxu0 0.0
    %754 = vmatpush.msra.mxu0 0.0
    %755 = vmatpush.msra.mxu0 0.0
    %756 = vmatpush.msra.mxu0 0.0
    %757 = vmatpush.msra.mxu0 0.0
    %758 = vmatpush.msra.mxu0 0.0
    %759 = vmatpush.msra.mxu0 0.0
    %760 = vmatpush.msra.mxu0 0.0
    %761 = vmatpush.msra.mxu0 0.0
    %762 = vmatpush.msra.mxu0 0.0
    %763 = vmatpush.msra.mxu0 0.0
    %764 = vmatpush.msra.mxu0 0.0
    %765 = vmatpush.msra.mxu0 0.0
    %766 = vmatpush.msra.mxu0 0.0
    %767 = vmatpush.msra.mxu0 %v747
    %768 = vmatmul.f32.gmra.mxu0 %v750
    %v769 = vpop.f32.mrf.mxu0
    %v770 = vadd.f32 0.0, %v769
    %771 = vdwg.mxu0
    %772 = vrot.lane.b32.xlu0 %v236, 64
    %v773 = vpop.permute.xlu0 %772
    %v776 = vsel %vm243, %v611, 0
    %778 = vmatpush.msra.mxu0 0.0
    %779 = vmatpush.msra.mxu0 0.0
    %780 = vmatpush.msra.mxu0 0.0
    %781 = vmatpush.msra.mxu0 0.0
    %782 = vmatpush.msra.mxu0 0.0
    %783 = vmatpush.msra.mxu0 0.0
    %784 = vmatpush.msra.mxu0 0.0
    %785 = vmatpush.msra.mxu0 0.0
    %786 = vmatpush.msra.mxu0 0.0
    %787 = vmatpush.msra.mxu0 0.0
    %788 = vmatpush.msra.mxu0 0.0
    %789 = vmatpush.msra.mxu0 0.0
    %790 = vmatpush.msra.mxu0 0.0
    %791 = vmatpush.msra.mxu0 0.0
    %792 = vmatpush.msra.mxu0 0.0
    %793 = vmatpush.msra.mxu0 %v773
    %794 = vmatmul.f32.gmra.mxu0 %v776
    %v795 = vpop.f32.mrf.mxu0
    %v796 = vadd.f32 0.0, %v795
    %797 = vdwg.mxu0
    %798 = vrot.lane.b32.xlu0 %v238, 64
    %v799 = vpop.permute.xlu0 %798
    %v802 = vsel %vm243, %v626, 0
    %804 = vmatpush.msra.mxu0 0.0
    %805 = vmatpush.msra.mxu0 0.0
    %806 = vmatpush.msra.mxu0 0.0
    %807 = vmatpush.msra.mxu0 0.0
    %808 = vmatpush.msra.mxu0 0.0
    %809 = vmatpush.msra.mxu0 0.0
    %810 = vmatpush.msra.mxu0 0.0
    %811 = vmatpush.msra.mxu0 0.0
    %812 = vmatpush.msra.mxu0 0.0
    %813 = vmatpush.msra.mxu0 0.0
    %814 = vmatpush.msra.mxu0 0.0
    %815 = vmatpush.msra.mxu0 0.0
    %816 = vmatpush.msra.mxu0 0.0
    %817 = vmatpush.msra.mxu0 0.0
    %818 = vmatpush.msra.mxu0 0.0
    %819 = vmatpush.msra.mxu0 %v799
    %820 = vmatmul.f32.gmra.mxu0 %v802
    %v821 = vpop.f32.mrf.mxu0
    %v822 = vadd.f32 0.0, %v821
    %823 = vdwg.mxu0
    %824 = vrot.lane.b32.xlu0 %v240, 64
    %v825 = vpop.permute.xlu0 %824
    %v828 = vsel %vm243, %v641, 0
    %830 = vmatpush.msra.mxu0 0.0
    %831 = vmatpush.msra.mxu0 0.0
    %832 = vmatpush.msra.mxu0 0.0
    %833 = vmatpush.msra.mxu0 0.0
    %834 = vmatpush.msra.mxu0 0.0
    %835 = vmatpush.msra.mxu0 0.0
    %836 = vmatpush.msra.mxu0 0.0
    %837 = vmatpush.msra.mxu0 0.0
    %838 = vmatpush.msra.mxu0 0.0
    %839 = vmatpush.msra.mxu0 0.0
    %840 = vmatpush.msra.mxu0 0.0
    %841 = vmatpush.msra.mxu0 0.0
    %842 = vmatpush.msra.mxu0 0.0
    %843 = vmatpush.msra.mxu0 0.0
    %844 = vmatpush.msra.mxu0 0.0
    %845 = vmatpush.msra.mxu0 %v825
    %846 = vmatmul.f32.gmra.mxu0 %v828
    %v847 = vpop.f32.mrf.mxu0
    %v848 = vadd.f32 0.0, %v847
    %849 = vdwg.mxu0
    %852 = vrot.lane.b32.xlu0 %v718, 8
    %v853 = vpop.permute.xlu0 %852
    %854 = vrot.lane.b32.xlu0 %v744, 8
    %v855 = vpop.permute.xlu0 %854
    %860 = vrot.lane.b32.xlu0 %v770, 16
    %v861 = vpop.permute.xlu0 %860
    %862 = vrot.lane.b32.xlu0 %v796, 16
    %v863 = vpop.permute.xlu0 %862
    %868 = vrot.lane.b32.xlu0 %v822, 24
    %v869 = vpop.permute.xlu0 %868
    %870 = vrot.lane.b32.xlu0 %v848, 24
    %v871 = vpop.permute.xlu0 %870
    %v874 = vsel %vm243, %v666, %v853
    %v875 = vsel %vm243, %v692, %v855
    %vm876 = vcmask 130048
    %v877 = vsel %vm876, %v874, %v861
    %v878 = vsel %vm876, %v875, %v863
    %vm879 = vcmask 195584
    %v880 = vsel %vm879, %v877, %v869
    %v881 = vsel %vm879, %v878, %v871
    %v882 = vld [vmem:[%s8] sm:$0xff]
    %v883 = vld [vmem:[%s8 + $0x8] sm:$0xff]
    %v884 = vld [vmem:[%s8 + $0x10] sm:$0xff]
    %v885 = vld [vmem:[%s8 + $0x18] sm:$0xff]
    %v886 = vld [vmem:[%s9] sm:$0x1]
    %v888 = vperm.slane %v886, 0
    %v891 = vsel %vm128, %v880, 0
    %v894 = vsel %vm128, %v881, 0
    %896 = vmatpush.msra.mxu0 0.0
    %897 = vmatpush.msra.mxu0 0.0
    %898 = vmatpush.msra.mxu0 0.0
    %899 = vmatpush.msra.mxu0 0.0
    %900 = vmatpush.msra.mxu0 0.0
    %901 = vmatpush.msra.mxu0 0.0
    %902 = vmatpush.msra.mxu0 0.0
    %903 = vmatpush.msra.mxu0 0.0
    %904 = vmatpush.msra.mxu0 0.0
    %905 = vmatpush.msra.mxu0 0.0
    %906 = vmatpush.msra.mxu0 0.0
    %907 = vmatpush.msra.mxu0 0.0
    %908 = vmatpush.msra.mxu0 %v885
    %909 = vmatpush.msra.mxu0 %v884
    %910 = vmatpush.msra.mxu0 %v883
    %911 = vmatpush.msra.mxu0 %v882
    %912 = vmatmul.f32.gmra.mxu0 %v891
    %v913 = vpop.f32.mrf.mxu0
    %v914 = vadd.f32 %v888, %v913
    %915 = vmatmul.f32.gmra.mxu0 %v894
    %v916 = vpop.f32.mrf.mxu0
    %v917 = vadd.f32 %v888, %v916
    %918 = vdwg.mxu0
    %v919 = vadd.f32 %v188, %v914
    %v920 = vadd.f32 %v189, %v917
    %v921 = vld [vmem:[%s10] sm:$0x1]
    %v922 = vld [vmem:[%s11] sm:$0x1]
    %v923 = vsel %vm128, %v919, 0.0
    %924 = vadd.xlane.f32.xlu0 %v923
    %v925 = vpop.xlane.xlu0 %924
    %v926 = vsel %vm128, %v920, 0.0
    %927 = vadd.xlane.f32.xlu0 %v926
    %v928 = vpop.xlane.xlu0 %927
    %v929 = vmul.f32 %v925, %v141
    %v930 = vmul.f32 %v928, %v141
    %v931 = vsub.f32 %v919, %v929
    %v932 = vsub.f32 %v920, %v930
    %v933 = vmul.f32 %v931, %v931
    %v934 = vmul.f32 %v932, %v932
    %v935 = vsel %vm128, %v933, 0.0
    %936 = vadd.xlane.f32.xlu0 %v935
    %v937 = vpop.xlane.xlu0 %936
    %v938 = vsel %vm128, %v934, 0.0
    %939 = vadd.xlane.f32.xlu0 %v938
    %v940 = vpop.xlane.xlu0 %939
    %v941 = vmul.f32 %v937, %v141
    %v942 = vmul.f32 %v940, %v141
    %v943 = vadd.f32 %v941, 1e-12
    %v944 = vadd.f32 %v942, 1e-12
    %v945 = vrsqrt.pop %v943
    %v946 = vmul.f32 %v945, %v943
    %v947 = vmul.f32 %v946, %v945
    %v948 = vmul.f32 0.5, %v947
    %v949 = vsub.f32 1.5, %v948
    %v950 = vmul.f32 %v945, %v949
    %vm951 = vweird.f32 %v943
    %vm952 = vweird.f32 %v945
    %vm953 = vmor %vm951, %vm952
    %v954 = vsel %vm953, %v945, %v950
    %v955 = vrsqrt.pop %v944
    %v956 = vmul.f32 %v955, %v944
    %v957 = vmul.f32 %v956, %v955
    %v958 = vmul.f32 0.5, %v957
    %v959 = vsub.f32 1.5, %v958
    %v960 = vmul.f32 %v955, %v959
    %vm961 = vweird.f32 %v944
    %vm962 = vweird.f32 %v955
    %vm963 = vmor %vm961, %vm962
    %v964 = vsel %vm963, %v955, %v960
    %v965 = vmul.f32 %v931, %v954
    %v966 = vmul.f32 %v932, %v964
    %v968 = vperm.slane %v921, 0
    %v970 = vmul.f32 %v965, %v968
    %v971 = vmul.f32 %v966, %v968
    %v973 = vperm.slane %v922, 0
    %v975 = vadd.f32 %v970, %v973
    %v976 = vadd.f32 %v971, %v973
    %v977 = vld [vmem:[%s12] sm:$0xff]
    %v978 = vld [vmem:[%s12 + $0x8] sm:$0xff]
    %v979 = vld [vmem:[%s12 + $0x10] sm:$0xff]
    %v980 = vld [vmem:[%s12 + $0x18] sm:$0xff]
    %v981 = vld [vmem:[%s13] sm:$0x1]
    %v983 = vperm.slane %v981, 0
    %v986 = vsel %vm128, %v975, 0
    %v989 = vsel %vm128, %v976, 0
    %991 = vmatpush.msra.mxu0 0.0
    %992 = vmatpush.msra.mxu0 0.0
    %993 = vmatpush.msra.mxu0 0.0
    %994 = vmatpush.msra.mxu0 0.0
    %995 = vmatpush.msra.mxu0 0.0
    %996 = vmatpush.msra.mxu0 0.0
    %997 = vmatpush.msra.mxu0 0.0
    %998 = vmatpush.msra.mxu0 0.0
    %999 = vmatpush.msra.mxu0 0.0
    %1000 = vmatpush.msra.mxu0 0.0
    %1001 = vmatpush.msra.mxu0 0.0
    %1002 = vmatpush.msra.mxu0 0.0
    %1003 = vmatpush.msra.mxu0 %v980
    %1004 = vmatpush.msra.mxu0 %v979
    %1005 = vmatpush.msra.mxu0 %v978
    %1006 = vmatpush.msra.mxu0 %v977
    %1007 = vmatmul.f32.gmra.mxu0 %v986
    %v1008 = vpop.f32.mrf.mxu0
    %v1009 = vadd.f32 %v983, %v1008
    %1010 = vmatmul.f32.gmra.mxu0 %v989
    %v1011 = vpop.f32.mrf.mxu0
    %v1012 = vadd.f32 %v983, %v1011
    %1013 = vdwg.mxu0
    %v1014 = vmul.f32 %v1009, 0.5
    %v1015 = vmul.f32 %v1012, 0.5
    %v1016 = vmul.f32 %v1009, 0.044715
    %v1017 = vmul.f32 %v1012, 0.044715
    %v1018 = vmul.f32 %v1016, %v1009
    %v1019 = vmul.f32 %v1017, %v1012
    %v1020 = vmul.f32 %v1018, %v1009
    %v1021 = vmul.f32 %v1019, %v1012
    %v1022 = vadd.f32 %v1009, %v1020
    %v1023 = vadd.f32 %v1012, %v1021
    %v1024 = vmul.f32 %v1022, 0.7978846
    %v1025 = vmul.f32 %v1023, 0.7978846
    %v1026 = vtanh.pop %v1024
    %v1027 = vtanh.pop %v1025
    %v1028 = vadd.f32 %v1026, 1.0
    %v1029 = vadd.f32 %v1027, 1.0
    %v1030 = vmul.f32 %v1014, %v1028
    %v1031 = vmul.f32 %v1015, %v1029
    %v1032 = vld [vmem:[%s14] sm:$0xff]
    %v1033 = vld [vmem:[%s14 + $0x8] sm:$0xff]
    %v1034 = vld [vmem:[%s14 + $0x10] sm:$0xff]
    %v1035 = vld [vmem:[%s14 + $0x18] sm:$0xff]
    %v1036 = vld [vmem:[%s14 + $0x20] sm:$0xff]
    %v1037 = vld [vmem:[%s14 + $0x28] sm:$0xff]
    %v1038 = vld [vmem:[%s14 + $0x30] sm:$0xff]
    %v1039 = vld [vmem:[%s14 + $0x38] sm:$0xff]
    %v1040 = vld [vmem:[%s15] sm:$0x1]
    %v1042 = vperm.slane %v1040, 0
    %vm1044 = vcmask 523264
    %v1046 = vsel %vm1044, %v1030, 0
    %v1049 = vsel %vm1044, %v1031, 0
    %1051 = vmatpush.msra.mxu0 0.0
    %1052 = vmatpush.msra.mxu0 0.0
    %1053 = vmatpush.msra.mxu0 0.0
    %1054 = vmatpush.msra.mxu0 0.0
    %1055 = vmatpush.msra.mxu0 0.0
    %1056 = vmatpush.msra.mxu0 0.0
    %1057 = vmatpush.msra.mxu0 0.0
    %1058 = vmatpush.msra.mxu0 0.0
    %1059 = vmatpush.msra.mxu0 %v1039
    %1060 = vmatpush.msra.mxu0 %v1038
    %1061 = vmatpush.msra.mxu0 %v1037
    %1062 = vmatpush.msra.mxu0 %v1036
    %1063 = vmatpush.msra.mxu0 %v1035
    %1064 = vmatpush.msra.mxu0 %v1034
    %1065 = vmatpush.msra.mxu0 %v1033
    %1066 = vmatpush.msra.mxu0 %v1032
    %1067 = vmatmul.f32.gmra.mxu0 %v1046
    %v1068 = vpop.f32.mrf.mxu0
    %v1069 = vadd.f32 %v1042, %v1068
    %1070 = vmatmul.f32.gmra.mxu0 %v1049
    %v1071 = vpop.f32.mrf.mxu0
    %v1072 = vadd.f32 %v1042, %v1071
    %1073 = vdwg.mxu0
    %v1074 = vadd.f32 %v975, %v1069
    %v1075 = vadd.f32 %v976, %v1072
    %v1076 = vld [vmem:[%s16] sm:$0x1]
    %v1077 = vld [vmem:[%s17] sm:$0x1]
    %v1078 = vsel %vm128, %v1074, 0.0
    %1079 = vadd.xlane.f32.xlu0 %v1078
    %v1080 = vpop.xlane.xlu0 %1079
    %v1081 = vsel %vm128, %v1075, 0.0
    %1082 = vadd.xlane.f32.xlu0 %v1081
    %v1083 = vpop.xlane.xlu0 %1082
    %v1084 = vmul.f32 %v1080, %v141
    %v1085 = vmul.f32 %v1083, %v141
    %v1086 = vsub.f32 %v1074, %v1084
    %v1087 = vsub.f32 %v1075, %v1085
    %v1088 = vmul.f32 %v1086, %v1086
    %v1089 = vmul.f32 %v1087, %v1087
    %v1090 = vsel %vm128, %v1088, 0.0
    %1091 = vadd.xlane.f32.xlu0 %v1090
    %v1092 = vpop.xlane.xlu0 %1091
    %v1093 = vsel %vm128, %v1089, 0.0
    %1094 = vadd.xlane.f32.xlu0 %v1093
    %v1095 = vpop.xlane.xlu0 %1094
    %v1096 = vmul.f32 %v1092, %v141
    %v1097 = vmul.f32 %v1095, %v141
    %v1098 = vadd.f32 %v1096, 1e-12
    %v1099 = vadd.f32 %v1097, 1e-12
    %v1100 = vrsqrt.pop %v1098
    %v1101 = vmul.f32 %v1100, %v1098
    %v1102 = vmul.f32 %v1101, %v1100
    %v1103 = vmul.f32 0.5, %v1102
    %v1104 = vsub.f32 1.5, %v1103
    %v1105 = vmul.f32 %v1100, %v1104
    %vm1106 = vweird.f32 %v1098
    %vm1107 = vweird.f32 %v1100
    %vm1108 = vmor %vm1106, %vm1107
    %v1109 = vsel %vm1108, %v1100, %v1105
    %v1110 = vrsqrt.pop %v1099
    %v1111 = vmul.f32 %v1110, %v1099
    %v1112 = vmul.f32 %v1111, %v1110
    %v1113 = vmul.f32 0.5, %v1112
    %v1114 = vsub.f32 1.5, %v1113
    %v1115 = vmul.f32 %v1110, %v1114
    %vm1116 = vweird.f32 %v1099
    %vm1117 = vweird.f32 %v1110
    %vm1118 = vmor %vm1116, %vm1117
    %v1119 = vsel %vm1118, %v1110, %v1115
    %v1120 = vmul.f32 %v1086, %v1109
    %v1121 = vmul.f32 %v1087, %v1119
    %v1123 = vperm.slane %v1076, 0
    %v1125 = vmul.f32 %v1120, %v1123
    %v1126 = vmul.f32 %v1121, %v1123
    %v1128 = vperm.slane %v1077, 0
    %v1130 = vadd.f32 %v1125, %v1128
    %v1131 = vadd.f32 %v1126, %v1128
    %s1132 = scalar_lea.vmem %s6, 32
    %v1133 = vld [vmem:[%s1132] sm:$0xff]
    %v1134 = vld [vmem:[%s1132 + $0x8] sm:$0xff]
    %v1135 = vld [vmem:[%s1132 + $0x10] sm:$0xff]
    %v1136 = vld [vmem:[%s1132 + $0x18] sm:$0xff]
    %s1137 = scalar_lea.vmem %s7, 1
    %v1138 = vld [vmem:[%s1137] sm:$0x1]
    %v1140 = vperm.slane %v1138, 0
    %v1143 = vsel %vm128, %v1130, 0
    %v1146 = vsel %vm128, %v1131, 0
    %1148 = vmatpush.msra.mxu0 0.0
    %1149 = vmatpush.msra.mxu0 0.0
    %1150 = vmatpush.msra.mxu0 0.0
    %1151 = vmatpush.msra.mxu0 0.0
    %1152 = vmatpush.msra.mxu0 0.0
    %1153 = vmatpush.msra.mxu0 0.0
    %1154 = vmatpush.msra.mxu0 0.0
    %1155 = vmatpush.msra.mxu0 0.0
    %1156 = vmatpush.msra.mxu0 0.0
    %1157 = vmatpush.msra.mxu0 0.0
    %1158 = vmatpush.msra.mxu0 0.0
    %1159 = vmatpush.msra.mxu0 0.0
    %1160 = vmatpush.msra.mxu0 %v1136
    %1161 = vmatpush.msra.mxu0 %v1135
    %1162 = vmatpush.msra.mxu0 %v1134
    %1163 = vmatpush.msra.mxu0 %v1133
    %1164 = vmatmul.f32.gmra.mxu0 %v1143
    %v1165 = vpop.f32.mrf.mxu0
    %v1166 = vadd.f32 %v1140, %v1165
    %1167 = vmatmul.f32.gmra.mxu0 %v1146
    %v1168 = vpop.f32.mrf.mxu0
    %v1169 = vadd.f32 %v1140, %v1168
    %1170 = vdwg.mxu0
    %1173 = vrot.lane.b32.xlu0 %v1166, 120
    %v1174 = vpop.permute.xlu0 %1173
    %1175 = vrot.lane.b32.xlu0 %v1169, 120
    %v1176 = vpop.permute.xlu0 %1175
    %1177 = vrot.lane.b32.xlu0 %v1166, 112
    %v1178 = vpop.permute.xlu0 %1177
    %1179 = vrot.lane.b32.xlu0 %v1169, 112
    %v1180 = vpop.permute.xlu0 %1179
    %1181 = vrot.lane.b32.xlu0 %v1166, 104
    %v1182 = vpop.permute.xlu0 %1181
    %1183 = vrot.lane.b32.xlu0 %v1169, 104
    %v1184 = vpop.permute.xlu0 %1183
    %1185 = vrot.lane.b32.xlu0 %v1166, 96
    %v1186 = vpop.permute.xlu0 %1185
    %v1187 = vsel %vm243, %v1166, 0
    %v1189 = vsel %vm243, %v1186, 0
    %1191 = vmatpush.xpose.msra.mxu0 0.0
    %1192 = vmatpush.xpose.msra.mxu0 0.0
    %1193 = vmatpush.xpose.msra.mxu0 0.0
    %1194 = vmatpush.xpose.msra.mxu0 0.0
    %1195 = vmatpush.xpose.msra.mxu0 0.0
    %1196 = vmatpush.xpose.msra.mxu0 0.0
    %1197 = vmatpush.xpose.msra.mxu0 0.0
    %1198 = vmatpush.xpose.msra.mxu0 0.0
    %1199 = vmatpush.xpose.msra.mxu0 0.0
    %1200 = vmatpush.xpose.msra.mxu0 0.0
    %1201 = vmatpush.xpose.msra.mxu0 0.0
    %1202 = vmatpush.xpose.msra.mxu0 0.0
    %1203 = vmatpush.xpose.msra.mxu0 0.0
    %1204 = vmatpush.xpose.msra.mxu0 0.0
    %1205 = vmatpush.xpose.msra.mxu0 0.0
    %1206 = vmatpush.xpose.msra.mxu0 %v1189
    %1207 = vmatmul.f32.gmra.mxu0 %v1187
    %v1208 = vpop.f32.mrf.mxu0
    %v1209 = vadd.f32 0.0, %v1208
    %1210 = vdwg.mxu0
    %1211 = vrot.lane.b32.xlu0 %v1169, 96
    %v1212 = vpop.permute.xlu0 %1211
    %v1213 = vsel %vm243, %v1169, 0
    %v1215 = vsel %vm243, %v1212, 0
    %1217 = vmatpush.xpose.msra.mxu0 0.0
    %1218 = vmatpush.xpose.msra.mxu0 0.0
    %1219 = vmatpush.xpose.msra.mxu0 0.0
    %1220 = vmatpush.xpose.msra.mxu0 0.0
    %1221 = vmatpush.xpose.msra.mxu0 0.0
    %1222 = vmatpush.xpose.msra.mxu0 0.0
    %1223 = vmatpush.xpose.msra.mxu0 0.0
    %1224 = vmatpush.xpose.msra.mxu0 0.0
    %1225 = vmatpush.xpose.msra.mxu0 0.0
    %1226 = vmatpush.xpose.msra.mxu0 0.0
    %1227 = vmatpush.xpose.msra.mxu0 0.0
    %1228 = vmatpush.xpose.msra.mxu0 0.0
    %1229 = vmatpush.xpose.msra.mxu0 0.0
    %1230 = vmatpush.xpose.msra.mxu0 0.0
    %1231 = vmatpush.xpose.msra.mxu0 0.0
    %1232 = vmatpush.xpose.msra.mxu0 %v1215
    %1233 = vmatmul.f32.gmra.mxu0 %v1213
    %v1234 = vpop.f32.mrf.mxu0
    %v1235 = vadd.f32 0.0, %v1234
    %1236 = vdwg.mxu0
    %1237 = vrot.lane.b32.xlu0 %v1174, 96
    %v1238 = vpop.permute.xlu0 %1237
    %v1239 = vsel %vm243, %v1174, 0
    %v1241 = vsel %vm243, %v1238, 0
    %1243 = vmatpush.xpose.msra.mxu0 0.0
    %1244 = vmatpush.xpose.msra.mxu0 0.0
    %1245 = vmatpush.xpose.msra.mxu0 0.0
    %1246 = vmatpush.xpose.msra.mxu0 0.0
    %1247 = vmatpush.xpose.msra.mxu0 0.0
    %1248 = vmatpush.xpose.msra.mxu0 0.0
    %1249 = vmatpush.xpose.msra.mxu0 0.0
    %1250 = vmatpush.xpose.msra.mxu0 0.0
    %1251 = vmatpush.xpose.msra.mxu0 0.0
    %1252 = vmatpush.xpose.msra.mxu0 0.0
    %1253 = vmatpush.xpose.msra.mxu0 0.0
    %1254 = vmatpush.xpose.msra.mxu0 0.0
    %1255 = vmatpush.xpose.msra.mxu0 0.0
    %1256 = vmatpush.xpose.msra.mxu0 0.0
    %1257 = vmatpush.xpose.msra.mxu0 0.0
    %1258 = vmatpush.xpose.msra.mxu0 %v1241
    %1259 = vmatmul.f32.gmra.mxu0 %v1239
    %v1260 = vpop.f32.mrf.mxu0
    %v1261 = vadd.f32 0.0, %v1260
    %1262 = vdwg.mxu0
    %1263 = vrot.lane.b32.xlu0 %v1176, 96
    %v1264 = vpop.permute.xlu0 %1263
    %v1265 = vsel %vm243, %v1176, 0
    %v1267 = vsel %vm243, %v1264, 0
    %1269 = vmatpush.xpose.msra.mxu0 0.0
    %1270 = vmatpush.xpose.msra.mxu0 0.0
    %1271 = vmatpush.xpose.msra.mxu0 0.0
    %1272 = vmatpush.xpose.msra.mxu0 0.0
    %1273 = vmatpush.xpose.msra.mxu0 0.0
    %1274 = vmatpush.xpose.msra.mxu0 0.0
    %1275 = vmatpush.xpose.msra.mxu0 0.0
    %1276 = vmatpush.xpose.msra.mxu0 0.0
    %1277 = vmatpush.xpose.msra.mxu0 0.0
    %1278 = vmatpush.xpose.msra.mxu0 0.0
    %1279 = vmatpush.xpose.msra.mxu0 0.0
    %1280 = vmatpush.xpose.msra.mxu0 0.0
    %1281 = vmatpush.xpose.msra.mxu0 0.0
    %1282 = vmatpush.xpose.msra.mxu0 0.0
    %1283 = vmatpush.xpose.msra.mxu0 0.0
    %1284 = vmatpush.xpose.msra.mxu0 %v1267
    %1285 = vmatmul.f32.gmra.mxu0 %v1265
    %v1286 = vpop.f32.mrf.mxu0
    %v1287 = vadd.f32 0.0, %v1286
    %1288 = vdwg.mxu0
    %1289 = vrot.lane.b32.xlu0 %v1178, 96
    %v1290 = vpop.permute.xlu0 %1289
    %v1291 = vsel %vm243, %v1178, 0
    %v1293 = vsel %vm243, %v1290, 0
    %1295 = vmatpush.xpose.msra.mxu0 0.0
    %1296 = vmatpush.xpose.msra.mxu0 0.0
    %1297 = vmatpush.xpose.msra.mxu0 0.0
    %1298 = vmatpush.xpose.msra.mxu0 0.0
    %1299 = vmatpush.xpose.msra.mxu0 0.0
    %1300 = vmatpush.xpose.msra.mxu0 0.0
    %1301 = vmatpush.xpose.msra.mxu0 0.0
    %1302 = vmatpush.xpose.msra.mxu0 0.0
    %1303 = vmatpush.xpose.msra.mxu0 0.0
    %1304 = vmatpush.xpose.msra.mxu0 0.0
    %1305 = vmatpush.xpose.msra.mxu0 0.0
    %1306 = vmatpush.xpose.msra.mxu0 0.0
    %1307 = vmatpush.xpose.msra.mxu0 0.0
    %1308 = vmatpush.xpose.msra.mxu0 0.0
    %1309 = vmatpush.xpose.msra.mxu0 0.0
    %1310 = vmatpush.xpose.msra.mxu0 %v1293
    %1311 = vmatmul.f32.gmra.mxu0 %v1291
    %v1312 = vpop.f32.mrf.mxu0
    %v1313 = vadd.f32 0.0, %v1312
    %1314 = vdwg.mxu0
    %1315 = vrot.lane.b32.xlu0 %v1180, 96
    %v1316 = vpop.permute.xlu0 %1315
    %v1317 = vsel %vm243, %v1180, 0
    %v1319 = vsel %vm243, %v1316, 0
    %1321 = vmatpush.xpose.msra.mxu0 0.0
    %1322 = vmatpush.xpose.msra.mxu0 0.0
    %1323 = vmatpush.xpose.msra.mxu0 0.0
    %1324 = vmatpush.xpose.msra.mxu0 0.0
    %1325 = vmatpush.xpose.msra.mxu0 0.0
    %1326 = vmatpush.xpose.msra.mxu0 0.0
    %1327 = vmatpush.xpose.msra.mxu0 0.0
    %1328 = vmatpush.xpose.msra.mxu0 0.0
    %1329 = vmatpush.xpose.msra.mxu0 0.0
    %1330 = vmatpush.xpose.msra.mxu0 0.0
    %1331 = vmatpush.xpose.msra.mxu0 0.0
    %1332 = vmatpush.xpose.msra.mxu0 0.0
    %1333 = vmatpush.xpose.msra.mxu0 0.0
    %1334 = vmatpush.xpose.msra.mxu0 0.0
    %1335 = vmatpush.xpose.msra.mxu0 0.0
    %1336 = vmatpush.xpose.msra.mxu0 %v1319
    %1337 = vmatmul.f32.gmra.mxu0 %v1317
    %v1338 = vpop.f32.mrf.mxu0
    %v1339 = vadd.f32 0.0, %v1338
    %1340 = vdwg.mxu0
    %1341 = vrot.lane.b32.xlu0 %v1182, 96
    %v1342 = vpop.permute.xlu0 %1341
    %v1343 = vsel %vm243, %v1182, 0
    %v1345 = vsel %vm243, %v1342, 0
    %1347 = vmatpush.xpose.msra.mxu0 0.0
    %1348 = vmatpush.xpose.msra.mxu0 0.0
    %1349 = vmatpush.xpose.msra.mxu0 0.0
    %1350 = vmatpush.xpose.msra.mxu0 0.0
    %1351 = vmatpush.xpose.msra.mxu0 0.0
    %1352 = vmatpush.xpose.msra.mxu0 0.0
    %1353 = vmatpush.xpose.msra.mxu0 0.0
    %1354 = vmatpush.xpose.msra.mxu0 0.0
    %1355 = vmatpush.xpose.msra.mxu0 0.0
    %1356 = vmatpush.xpose.msra.mxu0 0.0
    %1357 = vmatpush.xpose.msra.mxu0 0.0
    %1358 = vmatpush.xpose.msra.mxu0 0.0
    %1359 = vmatpush.xpose.msra.mxu0 0.0
    %1360 = vmatpush.xpose.msra.mxu0 0.0
    %1361 = vmatpush.xpose.msra.mxu0 0.0
    %1362 = vmatpush.xpose.msra.mxu0 %v1345
    %1363 = vmatmul.f32.gmra.mxu0 %v1343
    %v1364 = vpop.f32.mrf.mxu0
    %v1365 = vadd.f32 0.0, %v1364
    %1366 = vdwg.mxu0
    %1367 = vrot.lane.b32.xlu0 %v1184, 96
    %v1368 = vpop.permute.xlu0 %1367
    %v1369 = vsel %vm243, %v1184, 0
    %v1371 = vsel %vm243, %v1368, 0
    %1373 = vmatpush.xpose.msra.mxu0 0.0
    %1374 = vmatpush.xpose.msra.mxu0 0.0
    %1375 = vmatpush.xpose.msra.mxu0 0.0
    %1376 = vmatpush.xpose.msra.mxu0 0.0
    %1377 = vmatpush.xpose.msra.mxu0 0.0
    %1378 = vmatpush.xpose.msra.mxu0 0.0
    %1379 = vmatpush.xpose.msra.mxu0 0.0
    %1380 = vmatpush.xpose.msra.mxu0 0.0
    %1381 = vmatpush.xpose.msra.mxu0 0.0
    %1382 = vmatpush.xpose.msra.mxu0 0.0
    %1383 = vmatpush.xpose.msra.mxu0 0.0
    %1384 = vmatpush.xpose.msra.mxu0 0.0
    %1385 = vmatpush.xpose.msra.mxu0 0.0
    %1386 = vmatpush.xpose.msra.mxu0 0.0
    %1387 = vmatpush.xpose.msra.mxu0 0.0
    %1388 = vmatpush.xpose.msra.mxu0 %v1371
    %1389 = vmatmul.f32.gmra.mxu0 %v1369
    %v1390 = vpop.f32.mrf.mxu0
    %v1391 = vadd.f32 0.0, %v1390
    %1392 = vdwg.mxu0
    %v1393 = vsel %vm243, %v1209, -inf
    %1394 = vmax.xlane.f32.xlu0 %v1393
    %v1395 = vpop.xlane.xlu0 %1394
    %v1396 = vsel %vm243, %v1235, -inf
    %1397 = vmax.xlane.f32.xlu0 %v1396
    %v1398 = vpop.xlane.xlu0 %1397
    %v1399 = vsel %vm243, %v1261, -inf
    %1400 = vmax.xlane.f32.xlu0 %v1399
    %v1401 = vpop.xlane.xlu0 %1400
    %v1402 = vsel %vm243, %v1287, -inf
    %1403 = vmax.xlane.f32.xlu0 %v1402
    %v1404 = vpop.xlane.xlu0 %1403
    %v1405 = vsel %vm243, %v1313, -inf
    %1406 = vmax.xlane.f32.xlu0 %v1405
    %v1407 = vpop.xlane.xlu0 %1406
    %v1408 = vsel %vm243, %v1339, -inf
    %1409 = vmax.xlane.f32.xlu0 %v1408
    %v1410 = vpop.xlane.xlu0 %1409
    %v1411 = vsel %vm243, %v1365, -inf
    %1412 = vmax.xlane.f32.xlu0 %v1411
    %v1413 = vpop.xlane.xlu0 %1412
    %v1414 = vsel %vm243, %v1391, -inf
    %1415 = vmax.xlane.f32.xlu0 %v1414
    %v1416 = vpop.xlane.xlu0 %1415
    %v1417 = vsub.f32 %v1209, %v1395
    %v1418 = vsub.f32 %v1235, %v1398
    %v1419 = vsub.f32 %v1261, %v1401
    %v1420 = vsub.f32 %v1287, %v1404
    %v1421 = vsub.f32 %v1313, %v1407
    %v1422 = vsub.f32 %v1339, %v1410
    %v1423 = vsub.f32 %v1365, %v1413
    %v1424 = vsub.f32 %v1391, %v1416
    %v1425 = vmul.f32 %v1417, 1.442695
    %v1426 = vpow.pop %v1425
    %v1427 = vmul.f32 %v1418, 1.442695
    %v1428 = vpow.pop %v1427
    %v1429 = vmul.f32 %v1419, 1.442695
    %v1430 = vpow.pop %v1429
    %v1431 = vmul.f32 %v1420, 1.442695
    %v1432 = vpow.pop %v1431
    %v1433 = vmul.f32 %v1421, 1.442695
    %v1434 = vpow.pop %v1433
    %v1435 = vmul.f32 %v1422, 1.442695
    %v1436 = vpow.pop %v1435
    %v1437 = vmul.f32 %v1423, 1.442695
    %v1438 = vpow.pop %v1437
    %v1439 = vmul.f32 %v1424, 1.442695
    %v1440 = vpow.pop %v1439
    %v1441 = vsel %vm243, %v1426, 0.0
    %1442 = vadd.xlane.f32.xlu0 %v1441
    %v1443 = vpop.xlane.xlu0 %1442
    %v1444 = vsel %vm243, %v1428, 0.0
    %1445 = vadd.xlane.f32.xlu0 %v1444
    %v1446 = vpop.xlane.xlu0 %1445
    %v1447 = vsel %vm243, %v1430, 0.0
    %1448 = vadd.xlane.f32.xlu0 %v1447
    %v1449 = vpop.xlane.xlu0 %1448
    %v1450 = vsel %vm243, %v1432, 0.0
    %1451 = vadd.xlane.f32.xlu0 %v1450
    %v1452 = vpop.xlane.xlu0 %1451
    %v1453 = vsel %vm243, %v1434, 0.0
    %1454 = vadd.xlane.f32.xlu0 %v1453
    %v1455 = vpop.xlane.xlu0 %1454
    %v1456 = vsel %vm243, %v1436, 0.0
    %1457 = vadd.xlane.f32.xlu0 %v1456
    %v1458 = vpop.xlane.xlu0 %1457
    %v1459 = vsel %vm243, %v1438, 0.0
    %1460 = vadd.xlane.f32.xlu0 %v1459
    %v1461 = vpop.xlane.xlu0 %1460
    %v1462 = vsel %vm243, %v1440, 0.0
    %1463 = vadd.xlane.f32.xlu0 %v1462
    %v1464 = vpop.xlane.xlu0 %1463
    %v1465 = vrcp.pop %v1443
    %v1466 = vmul.f32 %v1443, %v1465
    %v1467 = vsub.f32 1.0, %v1466
    %v1468 = vmul.f32 %v1465, %v1467
    %v1469 = vadd.f32 %v1465, %v1468
    %vm1470 = vweird.f32 %v1443
    %vm1471 = vweird.f32 %v1465
    %vm1472 = vmor %vm1470, %vm1471
    %v1473 = vsel %vm1472, %v1465, %v1469
    %v1474 = vand.u32 2147483647, %v1443
    %vm1475 = vcmp.eq.f32.partialorder %v1474, 8.507059e+37
    %v1476 = vand.u32 %v1443, 2147483648
    %v1477 = vor.u32 1.1754944e-38, %v1476
    %v1478 = vsel %vm1475, %v1477, %v1473
    %v1479 = vmul.f32 %v1426, %v1478
    %v1480 = vrcp.pop %v1446
    %v1481 = vmul.f32 %v1446, %v1480
    %v1482 = vsub.f32 1.0, %v1481
    %v1483 = vmul.f32 %v1480, %v1482
    %v1484 = vadd.f32 %v1480, %v1483
    %vm1485 = vweird.f32 %v1446
    %vm1486 = vweird.f32 %v1480
    %vm1487 = vmor %vm1485, %vm1486
    %v1488 = vsel %vm1487, %v1480, %v1484
    %v1489 = vand.u32 2147483647, %v1446
    %vm1490 = vcmp.eq.f32.partialorder %v1489, 8.507059e+37
    %v1491 = vand.u32 %v1446, 2147483648
    %v1492 = vor.u32 1.1754944e-38, %v1491
    %v1493 = vsel %vm1490, %v1492, %v1488
    %v1494 = vmul.f32 %v1428, %v1493
    %v1495 = vrcp.pop %v1449
    %v1496 = vmul.f32 %v1449, %v1495
    %v1497 = vsub.f32 1.0, %v1496
    %v1498 = vmul.f32 %v1495, %v1497
    %v1499 = vadd.f32 %v1495, %v1498
    %vm1500 = vweird.f32 %v1449
    %vm1501 = vweird.f32 %v1495
    %vm1502 = vmor %vm1500, %vm1501
    %v1503 = vsel %vm1502, %v1495, %v1499
    %v1504 = vand.u32 2147483647, %v1449
    %vm1505 = vcmp.eq.f32.partialorder %v1504, 8.507059e+37
    %v1506 = vand.u32 %v1449, 2147483648
    %v1507 = vor.u32 1.1754944e-38, %v1506
    %v1508 = vsel %vm1505, %v1507, %v1503
    %v1509 = vmul.f32 %v1430, %v1508
    %v1510 = vrcp.pop %v1452
    %v1511 = vmul.f32 %v1452, %v1510
    %v1512 = vsub.f32 1.0, %v1511
    %v1513 = vmul.f32 %v1510, %v1512
    %v1514 = vadd.f32 %v1510, %v1513
    %vm1515 = vweird.f32 %v1452
    %vm1516 = vweird.f32 %v1510
    %vm1517 = vmor %vm1515, %vm1516
    %v1518 = vsel %vm1517, %v1510, %v1514
    %v1519 = vand.u32 2147483647, %v1452
    %vm1520 = vcmp.eq.f32.partialorder %v1519, 8.507059e+37
    %v1521 = vand.u32 %v1452, 2147483648
    %v1522 = vor.u32 1.1754944e-38, %v1521
    %v1523 = vsel %vm1520, %v1522, %v1518
    %v1524 = vmul.f32 %v1432, %v1523
    %v1525 = vrcp.pop %v1455
    %v1526 = vmul.f32 %v1455, %v1525
    %v1527 = vsub.f32 1.0, %v1526
    %v1528 = vmul.f32 %v1525, %v1527
    %v1529 = vadd.f32 %v1525, %v1528
    %vm1530 = vweird.f32 %v1455
    %vm1531 = vweird.f32 %v1525
    %vm1532 = vmor %vm1530, %vm1531
    %v1533 = vsel %vm1532, %v1525, %v1529
    %v1534 = vand.u32 2147483647, %v1455
    %vm1535 = vcmp.eq.f32.partialorder %v1534, 8.507059e+37
    %v1536 = vand.u32 %v1455, 2147483648
    %v1537 = vor.u32 1.1754944e-38, %v1536
    %v1538 = vsel %vm1535, %v1537, %v1533
    %v1539 = vmul.f32 %v1434, %v1538
    %v1540 = vrcp.pop %v1458
    %v1541 = vmul.f32 %v1458, %v1540
    %v1542 = vsub.f32 1.0, %v1541
    %v1543 = vmul.f32 %v1540, %v1542
    %v1544 = vadd.f32 %v1540, %v1543
    %vm1545 = vweird.f32 %v1458
    %vm1546 = vweird.f32 %v1540
    %vm1547 = vmor %vm1545, %vm1546
    %v1548 = vsel %vm1547, %v1540, %v1544
    %v1549 = vand.u32 2147483647, %v1458
    %vm1550 = vcmp.eq.f32.partialorder %v1549, 8.507059e+37
    %v1551 = vand.u32 %v1458, 2147483648
    %v1552 = vor.u32 1.1754944e-38, %v1551
    %v1553 = vsel %vm1550, %v1552, %v1548
    %v1554 = vmul.f32 %v1436, %v1553
    %v1555 = vrcp.pop %v1461
    %v1556 = vmul.f32 %v1461, %v1555
    %v1557 = vsub.f32 1.0, %v1556
    %v1558 = vmul.f32 %v1555, %v1557
    %v1559 = vadd.f32 %v1555, %v1558
    %vm1560 = vweird.f32 %v1461
    %vm1561 = vweird.f32 %v1555
    %vm1562 = vmor %vm1560, %vm1561
    %v1563 = vsel %vm1562, %v1555, %v1559
    %v1564 = vand.u32 2147483647, %v1461
    %vm1565 = vcmp.eq.f32.partialorder %v1564, 8.507059e+37
    %v1566 = vand.u32 %v1461, 2147483648
    %v1567 = vor.u32 1.1754944e-38, %v1566
    %v1568 = vsel %vm1565, %v1567, %v1563
    %v1569 = vmul.f32 %v1438, %v1568
    %v1570 = vrcp.pop %v1464
    %v1571 = vmul.f32 %v1464, %v1570
    %v1572 = vsub.f32 1.0, %v1571
    %v1573 = vmul.f32 %v1570, %v1572
    %v1574 = vadd.f32 %v1570, %v1573
    %vm1575 = vweird.f32 %v1464
    %vm1576 = vweird.f32 %v1570
    %vm1577 = vmor %vm1575, %vm1576
    %v1578 = vsel %vm1577, %v1570, %v1574
    %v1579 = vand.u32 2147483647, %v1464
    %vm1580 = vcmp.eq.f32.partialorder %v1579, 8.507059e+37
    %v1581 = vand.u32 %v1464, 2147483648
    %v1582 = vor.u32 1.1754944e-38, %v1581
    %v1583 = vsel %vm1580, %v1582, %v1578
    %v1584 = vmul.f32 %v1440, %v1583
    %1585 = vrot.lane.b32.xlu0 %v1166, 64
    %v1586 = vpop.permute.xlu0 %1585
    %v1589 = vsel %vm243, %v1479, 0
    %1591 = vmatpush.msra.mxu0 0.0
    %1592 = vmatpush.msra.mxu0 0.0
    %1593 = vmatpush.msra.mxu0 0.0
    %1594 = vmatpush.msra.mxu0 0.0
    %1595 = vmatpush.msra.mxu0 0.0
    %1596 = vmatpush.msra.mxu0 0.0
    %1597 = vmatpush.msra.mxu0 0.0
    %1598 = vmatpush.msra.mxu0 0.0
    %1599 = vmatpush.msra.mxu0 0.0
    %1600 = vmatpush.msra.mxu0 0.0
    %1601 = vmatpush.msra.mxu0 0.0
    %1602 = vmatpush.msra.mxu0 0.0
    %1603 = vmatpush.msra.mxu0 0.0
    %1604 = vmatpush.msra.mxu0 0.0
    %1605 = vmatpush.msra.mxu0 0.0
    %1606 = vmatpush.msra.mxu0 %v1586
    %1607 = vmatmul.f32.gmra.mxu0 %v1589
    %v1608 = vpop.f32.mrf.mxu0
    %v1609 = vadd.f32 0.0, %v1608
    %1610 = vdwg.mxu0
    %1611 = vrot.lane.b32.xlu0 %v1169, 64
    %v1612 = vpop.permute.xlu0 %1611
    %v1615 = vsel %vm243, %v1494, 0
    %1617 = vmatpush.msra.mxu0 0.0
    %1618 = vmatpush.msra.mxu0 0.0
    %1619 = vmatpush.msra.mxu0 0.0
    %1620 = vmatpush.msra.mxu0 0.0
    %1621 = vmatpush.msra.mxu0 0.0
    %1622 = vmatpush.msra.mxu0 0.0
    %1623 = vmatpush.msra.mxu0 0.0
    %1624 = vmatpush.msra.mxu0 0.0
    %1625 = vmatpush.msra.mxu0 0.0
    %1626 = vmatpush.msra.mxu0 0.0
    %1627 = vmatpush.msra.mxu0 0.0
    %1628 = vmatpush.msra.mxu0 0.0
    %1629 = vmatpush.msra.mxu0 0.0
    %1630 = vmatpush.msra.mxu0 0.0
    %1631 = vmatpush.msra.mxu0 0.0
    %1632 = vmatpush.msra.mxu0 %v1612
    %1633 = vmatmul.f32.gmra.mxu0 %v1615
    %v1634 = vpop.f32.mrf.mxu0
    %v1635 = vadd.f32 0.0, %v1634
    %1636 = vdwg.mxu0
    %1637 = vrot.lane.b32.xlu0 %v1174, 64
    %v1638 = vpop.permute.xlu0 %1637
    %v1641 = vsel %vm243, %v1509, 0
    %1643 = vmatpush.msra.mxu0 0.0
    %1644 = vmatpush.msra.mxu0 0.0
    %1645 = vmatpush.msra.mxu0 0.0
    %1646 = vmatpush.msra.mxu0 0.0
    %1647 = vmatpush.msra.mxu0 0.0
    %1648 = vmatpush.msra.mxu0 0.0
    %1649 = vmatpush.msra.mxu0 0.0
    %1650 = vmatpush.msra.mxu0 0.0
    %1651 = vmatpush.msra.mxu0 0.0
    %1652 = vmatpush.msra.mxu0 0.0
    %1653 = vmatpush.msra.mxu0 0.0
    %1654 = vmatpush.msra.mxu0 0.0
    %1655 = vmatpush.msra.mxu0 0.0
    %1656 = vmatpush.msra.mxu0 0.0
    %1657 = vmatpush.msra.mxu0 0.0
    %1658 = vmatpush.msra.mxu0 %v1638
    %1659 = vmatmul.f32.gmra.mxu0 %v1641
    %v1660 = vpop.f32.mrf.mxu0
    %v1661 = vadd.f32 0.0, %v1660
    %1662 = vdwg.mxu0
    %1663 = vrot.lane.b32.xlu0 %v1176, 64
    %v1664 = vpop.permute.xlu0 %1663
    %v1667 = vsel %vm243, %v1524, 0
    %1669 = vmatpush.msra.mxu0 0.0
    %1670 = vmatpush.msra.mxu0 0.0
    %1671 = vmatpush.msra.mxu0 0.0
    %1672 = vmatpush.msra.mxu0 0.0
    %1673 = vmatpush.msra.mxu0 0.0
    %1674 = vmatpush.msra.mxu0 0.0
    %1675 = vmatpush.msra.mxu0 0.0
    %1676 = vmatpush.msra.mxu0 0.0
    %1677 = vmatpush.msra.mxu0 0.0
    %1678 = vmatpush.msra.mxu0 0.0
    %1679 = vmatpush.msra.mxu0 0.0
    %1680 = vmatpush.msra.mxu0 0.0
    %1681 = vmatpush.msra.mxu0 0.0
    %1682 = vmatpush.msra.mxu0 0.0
    %1683 = vmatpush.msra.mxu0 0.0
    %1684 = vmatpush.msra.mxu0 %v1664
    %1685 = vmatmul.f32.gmra.mxu0 %v1667
    %v1686 = vpop.f32.mrf.mxu0
    %v1687 = vadd.f32 0.0, %v1686
    %1688 = vdwg.mxu0
    %1689 = vrot.lane.b32.xlu0 %v1178, 64
    %v1690 = vpop.permute.xlu0 %1689
    %v1693 = vsel %vm243, %v1539, 0
    %1695 = vmatpush.msra.mxu0 0.0
    %1696 = vmatpush.msra.mxu0 0.0
    %1697 = vmatpush.msra.mxu0 0.0
    %1698 = vmatpush.msra.mxu0 0.0
    %1699 = vmatpush.msra.mxu0 0.0
    %1700 = vmatpush.msra.mxu0 0.0
    %1701 = vmatpush.msra.mxu0 0.0
    %1702 = vmatpush.msra.mxu0 0.0
    %1703 = vmatpush.msra.mxu0 0.0
    %1704 = vmatpush.msra.mxu0 0.0
    %1705 = vmatpush.msra.mxu0 0.0
    %1706 = vmatpush.msra.mxu0 0.0
    %1707 = vmatpush.msra.mxu0 0.0
    %1708 = vmatpush.msra.mxu0 0.0
    %1709 = vmatpush.msra.mxu0 0.0
    %1710 = vmatpush.msra.mxu0 %v1690
    %1711 = vmatmul.f32.gmra.mxu0 %v1693
    %v1712 = vpop.f32.mrf.mxu0
    %v1713 = vadd.f32 0.0, %v1712
    %1714 = vdwg.mxu0
    %1715 = vrot.lane.b32.xlu0 %v1180, 64
    %v1716 = vpop.permute.xlu0 %1715
    %v1719 = vsel %vm243, %v1554, 0
    %1721 = vmatpush.msra.mxu0 0.0
    %1722 = vmatpush.msra.mxu0 0.0
    %1723 = vmatpush.msra.mxu0 0.0
    %1724 = vmatpush.msra.mxu0 0.0
    %1725 = vmatpush.msra.mxu0 0.0
    %1726 = vmatpush.msra.mxu0 0.0
    %1727 = vmatpush.msra.mxu0 0.0
    %1728 = vmatpush.msra.mxu0 0.0
    %1729 = vmatpush.msra.mxu0 0.0
    %1730 = vmatpush.msra.mxu0 0.0
    %1731 = vmatpush.msra.mxu0 0.0
    %1732 = vmatpush.msra.mxu0 0.0
    %1733 = vmatpush.msra.mxu0 0.0
    %1734 = vmatpush.msra.mxu0 0.0
    %1735 = vmatpush.msra.mxu0 0.0
    %1736 = vmatpush.msra.mxu0 %v1716
    %1737 = vmatmul.f32.gmra.mxu0 %v1719
    %v1738 = vpop.f32.mrf.mxu0
    %v1739 = vadd.f32 0.0, %v1738
    %1740 = vdwg.mxu0
    %1741 = vrot.lane.b32.xlu0 %v1182, 64
    %v1742 = vpop.permute.xlu0 %1741
    %v1745 = vsel %vm243, %v1569, 0
    %1747 = vmatpush.msra.mxu0 0.0
    %1748 = vmatpush.msra.mxu0 0.0
    %1749 = vmatpush.msra.mxu0 0.0
    %1750 = vmatpush.msra.mxu0 0.0
    %1751 = vmatpush.msra.mxu0 0.0
    %1752 = vmatpush.msra.mxu0 0.0
    %1753 = vmatpush.msra.mxu0 0.0
    %1754 = vmatpush.msra.mxu0 0.0
    %1755 = vmatpush.msra.mxu0 0.0
    %1756 = vmatpush.msra.mxu0 0.0
    %1757 = vmatpush.msra.mxu0 0.0
    %1758 = vmatpush.msra.mxu0 0.0
    %1759 = vmatpush.msra.mxu0 0.0
    %1760 = vmatpush.msra.mxu0 0.0
    %1761 = vmatpush.msra.mxu0 0.0
    %1762 = vmatpush.msra.mxu0 %v1742
    %1763 = vmatmul.f32.gmra.mxu0 %v1745
    %v1764 = vpop.f32.mrf.mxu0
    %v1765 = vadd.f32 0.0, %v1764
    %1766 = vdwg.mxu0
    %1767 = vrot.lane.b32.xlu0 %v1184, 64
    %v1768 = vpop.permute.xlu0 %1767
    %v1771 = vsel %vm243, %v1584, 0
    %1773 = vmatpush.msra.mxu0 0.0
    %1774 = vmatpush.msra.mxu0 0.0
    %1775 = vmatpush.msra.mxu0 0.0
    %1776 = vmatpush.msra.mxu0 0.0
    %1777 = vmatpush.msra.mxu0 0.0
    %1778 = vmatpush.msra.mxu0 0.0
    %1779 = vmatpush.msra.mxu0 0.0
    %1780 = vmatpush.msra.mxu0 0.0
    %1781 = vmatpush.msra.mxu0 0.0
    %1782 = vmatpush.msra.mxu0 0.0
    %1783 = vmatpush.msra.mxu0 0.0
    %1784 = vmatpush.msra.mxu0 0.0
    %1785 = vmatpush.msra.mxu0 0.0
    %1786 = vmatpush.msra.mxu0 0.0
    %1787 = vmatpush.msra.mxu0 0.0
    %1788 = vmatpush.msra.mxu0 %v1768
    %1789 = vmatmul.f32.gmra.mxu0 %v1771
    %v1790 = vpop.f32.mrf.mxu0
    %v1791 = vadd.f32 0.0, %v1790
    %1792 = vdwg.mxu0
    %1795 = vrot.lane.b32.xlu0 %v1661, 8
    %v1796 = vpop.permute.xlu0 %1795
    %1797 = vrot.lane.b32.xlu0 %v1687, 8
    %v1798 = vpop.permute.xlu0 %1797
    %1803 = vrot.lane.b32.xlu0 %v1713, 16
    %v1804 = vpop.permute.xlu0 %1803
    %1805 = vrot.lane.b32.xlu0 %v1739, 16
    %v1806 = vpop.permute.xlu0 %1805
    %1811 = vrot.lane.b32.xlu0 %v1765, 24
    %v1812 = vpop.permute.xlu0 %1811
    %1813 = vrot.lane.b32.xlu0 %v1791, 24
    %v1814 = vpop.permute.xlu0 %1813
    %v1817 = vsel %vm243, %v1609, %v1796
    %v1818 = vsel %vm243, %v1635, %v1798
    %v1819 = vsel %vm876, %v1817, %v1804
    %v1820 = vsel %vm876, %v1818, %v1806
    %v1821 = vsel %vm879, %v1819, %v1812
    %v1822 = vsel %vm879, %v1820, %v1814
    %s1823 = scalar_lea.vmem %s8, 32
    %v1824 = vld [vmem:[%s1823] sm:$0xff]
    %v1825 = vld [vmem:[%s1823 + $0x8] sm:$0xff]
    %v1826 = vld [vmem:[%s1823 + $0x10] sm:$0xff]
    %v1827 = vld [vmem:[%s1823 + $0x18] sm:$0xff]
    %s1828 = scalar_lea.vmem %s9, 1
    %v1829 = vld [vmem:[%s1828] sm:$0x1]
    %v1831 = vperm.slane %v1829, 0
    %v1834 = vsel %vm128, %v1821, 0
    %v1837 = vsel %vm128, %v1822, 0
    %1839 = vmatpush.msra.mxu0 0.0
    %1840 = vmatpush.msra.mxu0 0.0
    %1841 = vmatpush.msra.mxu0 0.0
    %1842 = vmatpush.msra.mxu0 0.0
    %1843 = vmatpush.msra.mxu0 0.0
    %1844 = vmatpush.msra.mxu0 0.0
    %1845 = vmatpush.msra.mxu0 0.0
    %1846 = vmatpush.msra.mxu0 0.0
    %1847 = vmatpush.msra.mxu0 0.0
    %1848 = vmatpush.msra.mxu0 0.0
    %1849 = vmatpush.msra.mxu0 0.0
    %1850 = vmatpush.msra.mxu0 0.0
    %1851 = vmatpush.msra.mxu0 %v1827
    %1852 = vmatpush.msra.mxu0 %v1826
    %1853 = vmatpush.msra.mxu0 %v1825
    %1854 = vmatpush.msra.mxu0 %v1824
    %1855 = vmatmul.f32.gmra.mxu0 %v1834
    %v1856 = vpop.f32.mrf.mxu0
    %v1857 = vadd.f32 %v1831, %v1856
    %1858 = vmatmul.f32.gmra.mxu0 %v1837
    %v1859 = vpop.f32.mrf.mxu0
    %v1860 = vadd.f32 %v1831, %v1859
    %1861 = vdwg.mxu0
    %v1862 = vadd.f32 %v1130, %v1857
    %v1863 = vadd.f32 %v1131, %v1860
    %s1864 = scalar_lea.vmem %s10, 1
    %v1865 = vld [vmem:[%s1864] sm:$0x1]
    %s1866 = scalar_lea.vmem %s11, 1
    %v1867 = vld [vmem:[%s1866] sm:$0x1]
    %v1868 = vsel %vm128, %v1862, 0.0
    %1869 = vadd.xlane.f32.xlu0 %v1868
    %v1870 = vpop.xlane.xlu0 %1869
    %v1871 = vsel %vm128, %v1863, 0.0
    %1872 = vadd.xlane.f32.xlu0 %v1871
    %v1873 = vpop.xlane.xlu0 %1872
    %v1874 = vmul.f32 %v1870, %v141
    %v1875 = vmul.f32 %v1873, %v141
    %v1876 = vsub.f32 %v1862, %v1874
    %v1877 = vsub.f32 %v1863, %v1875
    %v1878 = vmul.f32 %v1876, %v1876
    %v1879 = vmul.f32 %v1877, %v1877
    %v1880 = vsel %vm128, %v1878, 0.0
    %1881 = vadd.xlane.f32.xlu0 %v1880
    %v1882 = vpop.xlane.xlu0 %1881
    %v1883 = vsel %vm128, %v1879, 0.0
    %1884 = vadd.xlane.f32.xlu0 %v1883
    %v1885 = vpop.xlane.xlu0 %1884
    %v1886 = vmul.f32 %v1882, %v141
    %v1887 = vmul.f32 %v1885, %v141
    %v1888 = vadd.f32 %v1886, 1e-12
    %v1889 = vadd.f32 %v1887, 1e-12
    %v1890 = vrsqrt.pop %v1888
    %v1891 = vmul.f32 %v1890, %v1888
    %v1892 = vmul.f32 %v1891, %v1890
    %v1893 = vmul.f32 0.5, %v1892
    %v1894 = vsub.f32 1.5, %v1893
    %v1895 = vmul.f32 %v1890, %v1894
    %vm1896 = vweird.f32 %v1888
    %vm1897 = vweird.f32 %v1890
    %vm1898 = vmor %vm1896, %vm1897
    %v1899 = vsel %vm1898, %v1890, %v1895
    %v1900 = vrsqrt.pop %v1889
    %v1901 = vmul.f32 %v1900, %v1889
    %v1902 = vmul.f32 %v1901, %v1900
    %v1903 = vmul.f32 0.5, %v1902
    %v1904 = vsub.f32 1.5, %v1903
    %v1905 = vmul.f32 %v1900, %v1904
    %vm1906 = vweird.f32 %v1889
    %vm1907 = vweird.f32 %v1900
    %vm1908 = vmor %vm1906, %vm1907
    %v1909 = vsel %vm1908, %v1900, %v1905
    %v1910 = vmul.f32 %v1876, %v1899
    %v1911 = vmul.f32 %v1877, %v1909
    %v1913 = vperm.slane %v1865, 0
    %v1915 = vmul.f32 %v1910, %v1913
    %v1916 = vmul.f32 %v1911, %v1913
    %v1918 = vperm.slane %v1867, 0
    %v1920 = vadd.f32 %v1915, %v1918
    %v1921 = vadd.f32 %v1916, %v1918
    %s1922 = scalar_lea.vmem %s12, 32
    %v1923 = vld [vmem:[%s1922] sm:$0xff]
    %v1924 = vld [vmem:[%s1922 + $0x8] sm:$0xff]
    %v1925 = vld [vmem:[%s1922 + $0x10] sm:$0xff]
    %v1926 = vld [vmem:[%s1922 + $0x18] sm:$0xff]
    %s1927 = scalar_lea.vmem %s13, 1
    %v1928 = vld [vmem:[%s1927] sm:$0x1]
    %v1930 = vperm.slane %v1928, 0
    %v1933 = vsel %vm128, %v1920, 0
    %v1936 = vsel %vm128, %v1921, 0
    %1938 = vmatpush.msra.mxu0 0.0
    %1939 = vmatpush.msra.mxu0 0.0
    %1940 = vmatpush.msra.mxu0 0.0
    %1941 = vmatpush.msra.mxu0 0.0
    %1942 = vmatpush.msra.mxu0 0.0
    %1943 = vmatpush.msra.mxu0 0.0
    %1944 = vmatpush.msra.mxu0 0.0
    %1945 = vmatpush.msra.mxu0 0.0
    %1946 = vmatpush.msra.mxu0 0.0
    %1947 = vmatpush.msra.mxu0 0.0
    %1948 = vmatpush.msra.mxu0 0.0
    %1949 = vmatpush.msra.mxu0 0.0
    %1950 = vmatpush.msra.mxu0 %v1926
    %1951 = vmatpush.msra.mxu0 %v1925
    %1952 = vmatpush.msra.mxu0 %v1924
    %1953 = vmatpush.msra.mxu0 %v1923
    %1954 = vmatmul.f32.gmra.mxu0 %v1933
    %v1955 = vpop.f32.mrf.mxu0
    %v1956 = vadd.f32 %v1930, %v1955
    %1957 = vmatmul.f32.gmra.mxu0 %v1936
    %v1958 = vpop.f32.mrf.mxu0
    %v1959 = vadd.f32 %v1930, %v1958
    %1960 = vdwg.mxu0
    %v1961 = vmul.f32 %v1956, 0.5
    %v1962 = vmul.f32 %v1959, 0.5
    %v1963 = vmul.f32 %v1956, 0.044715
    %v1964 = vmul.f32 %v1959, 0.044715
    %v1965 = vmul.f32 %v1963, %v1956
    %v1966 = vmul.f32 %v1964, %v1959
    %v1967 = vmul.f32 %v1965, %v1956
    %v1968 = vmul.f32 %v1966, %v1959
    %v1969 = vadd.f32 %v1956, %v1967
    %v1970 = vadd.f32 %v1959, %v1968
    %v1971 = vmul.f32 %v1969, 0.7978846
    %v1972 = vmul.f32 %v1970, 0.7978846
    %v1973 = vtanh.pop %v1971
    %v1974 = vtanh.pop %v1972
    %v1975 = vadd.f32 %v1973, 1.0
    %v1976 = vadd.f32 %v1974, 1.0
    %v1977 = vmul.f32 %v1961, %v1975
    %v1978 = vmul.f32 %v1962, %v1976
    %s1979 = scalar_lea.vmem %s14, 64
    %v1980 = vld [vmem:[%s1979] sm:$0xff]
    %v1981 = vld [vmem:[%s1979 + $0x8] sm:$0xff]
    %v1982 = vld [vmem:[%s1979 + $0x10] sm:$0xff]
    %v1983 = vld [vmem:[%s1979 + $0x18] sm:$0xff]
    %v1984 = vld [vmem:[%s1979 + $0x20] sm:$0xff]
    %v1985 = vld [vmem:[%s1979 + $0x28] sm:$0xff]
    %v1986 = vld [vmem:[%s1979 + $0x30] sm:$0xff]
    %v1987 = vld [vmem:[%s1979 + $0x38] sm:$0xff]
    %s1988 = scalar_lea.vmem %s15, 1
    %v1989 = vld [vmem:[%s1988] sm:$0x1]
    %v1991 = vperm.slane %v1989, 0
    %v1994 = vsel %vm1044, %v1977, 0
    %v1997 = vsel %vm1044, %v1978, 0
    %1999 = vmatpush.msra.mxu0 0.0
    %2000 = vmatpush.msra.mxu0 0.0
    %2001 = vmatpush.msra.mxu0 0.0
    %2002 = vmatpush.msra.mxu0 0.0
    %2003 = vmatpush.msra.mxu0 0.0
    %2004 = vmatpush.msra.mxu0 0.0
    %2005 = vmatpush.msra.mxu0 0.0
    %2006 = vmatpush.msra.mxu0 0.0
    %2007 = vmatpush.msra.mxu0 %v1987
    %2008 = vmatpush.msra.mxu0 %v1986
    %2009 = vmatpush.msra.mxu0 %v1985
    %2010 = vmatpush.msra.mxu0 %v1984
    %2011 = vmatpush.msra.mxu0 %v1983
    %2012 = vmatpush.msra.mxu0 %v1982
    %2013 = vmatpush.msra.mxu0 %v1981
    %2014 = vmatpush.msra.mxu0 %v1980
    %2015 = vmatmul.f32.gmra.mxu0 %v1994
    %v2016 = vpop.f32.mrf.mxu0
    %v2017 = vadd.f32 %v1991, %v2016
    %2018 = vmatmul.f32.gmra.mxu0 %v1997
    %v2019 = vpop.f32.mrf.mxu0
    %v2020 = vadd.f32 %v1991, %v2019
    %2021 = vdwg.mxu0
    %v2022 = vadd.f32 %v1920, %v2017
    %v2023 = vadd.f32 %v1921, %v2020
    %s2024 = scalar_lea.vmem %s16, 1
    %v2025 = vld [vmem:[%s2024] sm:$0x1]
    %s2026 = scalar_lea.vmem %s17, 1
    %v2027 = vld [vmem:[%s2026] sm:$0x1]
    %v2028 = vsel %vm128, %v2022, 0.0
    %2029 = vadd.xlane.f32.xlu0 %v2028
    %v2030 = vpop.xlane.xlu0 %2029
    %v2031 = vsel %vm128, %v2023, 0.0
    %2032 = vadd.xlane.f32.xlu0 %v2031
    %v2033 = vpop.xlane.xlu0 %2032
    %v2034 = vmul.f32 %v2030, %v141
    %v2035 = vmul.f32 %v2033, %v141
    %v2036 = vsub.f32 %v2022, %v2034
    %v2037 = vsub.f32 %v2023, %v2035
    %v2038 = vmul.f32 %v2036, %v2036
    %v2039 = vmul.f32 %v2037, %v2037
    %v2040 = vsel %vm128, %v2038, 0.0
    %2041 = vadd.xlane.f32.xlu0 %v2040
    %v2042 = vpop.xlane.xlu0 %2041
    %v2043 = vsel %vm128, %v2039, 0.0
    %2044 = vadd.xlane.f32.xlu0 %v2043
    %v2045 = vpop.xlane.xlu0 %2044
    %v2046 = vmul.f32 %v2042, %v141
    %v2047 = vmul.f32 %v2045, %v141
    %v2048 = vadd.f32 %v2046, 1e-12
    %v2049 = vadd.f32 %v2047, 1e-12
    %v2050 = vrsqrt.pop %v2048
    %v2051 = vmul.f32 %v2050, %v2048
    %v2052 = vmul.f32 %v2051, %v2050
    %v2053 = vmul.f32 0.5, %v2052
    %v2054 = vsub.f32 1.5, %v2053
    %v2055 = vmul.f32 %v2050, %v2054
    %vm2056 = vweird.f32 %v2048
    %vm2057 = vweird.f32 %v2050
    %vm2058 = vmor %vm2056, %vm2057
    %v2059 = vsel %vm2058, %v2050, %v2055
    %v2060 = vrsqrt.pop %v2049
    %v2061 = vmul.f32 %v2060, %v2049
    %v2062 = vmul.f32 %v2061, %v2060
    %v2063 = vmul.f32 0.5, %v2062
    %v2064 = vsub.f32 1.5, %v2063
    %v2065 = vmul.f32 %v2060, %v2064
    %vm2066 = vweird.f32 %v2049
    %vm2067 = vweird.f32 %v2060
    %vm2068 = vmor %vm2066, %vm2067
    %v2069 = vsel %vm2068, %v2060, %v2065
    %v2070 = vmul.f32 %v2036, %v2059
    %v2071 = vmul.f32 %v2037, %v2069
    %v2073 = vperm.slane %v2025, 0
    %v2075 = vmul.f32 %v2070, %v2073
    %v2076 = vmul.f32 %v2071, %v2073
    %v2078 = vperm.slane %v2027, 0
    %v2080 = vadd.f32 %v2075, %v2078
    %v2081 = vadd.f32 %v2076, %v2078
    %v2082 = vld [vmem:[%s18] sm:$0xff]
    %v2083 = vld [vmem:[%s18 + $0x8] sm:$0xff]
    %v2084 = vld [vmem:[%s18 + $0x10] sm:$0xff]
    %v2085 = vld [vmem:[%s18 + $0x18] sm:$0xff]
    %v2086 = vld [vmem:[%s19] sm:$0x1]
    %v2088 = vperm.slane %v2086, 0
    %v2092 = vrot.slane %v2081, 7
    %vm2093 = vcmask 1041409
    %v2094 = vsel %vm2093, %v2092, %v2080
    %v2095 = vsel %vm128, %v2094, 0
    %2097 = vmatpush.msra.mxu0 0.0
    %2098 = vmatpush.msra.mxu0 0.0
    %2099 = vmatpush.msra.mxu0 0.0
    %2100 = vmatpush.msra.mxu0 0.0
    %2101 = vmatpush.msra.mxu0 0.0
    %2102 = vmatpush.msra.mxu0 0.0
    %2103 = vmatpush.msra.mxu0 0.0
    %2104 = vmatpush.msra.mxu0 0.0
    %2105 = vmatpush.msra.mxu0 0.0
    %2106 = vmatpush.msra.mxu0 0.0
    %2107 = vmatpush.msra.mxu0 0.0
    %2108 = vmatpush.msra.mxu0 0.0
    %2109 = vmatpush.msra.mxu0 %v2085
    %2110 = vmatpush.msra.mxu0 %v2084
    %2111 = vmatpush.msra.mxu0 %v2083
    %2112 = vmatpush.msra.mxu0 %v2082
    %2113 = vmatmul.f32.gmra.mxu0 %v2095
    %v2114 = vpop.f32.mrf.mxu0
    %v2115 = vadd.f32 %v2088, %v2114
    %2116 = vdwg.mxu0
    %vm2117 = vcmask 17408
    %2118 = vst.msk [vmem:[#allocation2] sm:$0x3] %vm2117, %v2115
    // Predicated region
    $region82: #{bert_for_seq_cls.1} parent=1 // pred_check
      _
    $region83: #{bert_for_seq_cls.1} parent=1 // pred_check_branch
      %2120 = sbr.rel (0) target = $region85
    $region84: #{bert_for_seq_cls.1} parent=1 // pred_region
      %2122 = vsyncadd [#allocation3], 0
      %s2124 = sshll.u32 [#allocation2], 4
      %s2125 = int_to_ptr.vmem [resolvable:$true] %s2124
      %s2126 = sshll.u32 %s20, 4
      %s2127 = int_to_ptr.hbm [resolvable:$true] %s2126
      %2129 = dma.vmem_to_hbm [thread:$0]  %s2125, 32, %s2127, [#allocation3]
    $region85: #{bert_for_seq_cls.1} parent=1 // pred_fallthru
      _
    // Predicated region
    $region86: #{bert_for_seq_cls.1} parent=1 // pred_check
      _
    $region87: #{bert_for_seq_cls.1} parent=1 // pred_check_branch
      %2131 = sbr.rel (0) target = $region89
    $region88: #{bert_for_seq_cls.1} parent=1 // pred_region
      %2133 = dma.done [#allocation3], 32
    $region89: #{bert_for_seq_cls.1} parent=1 // pred_fallthru
      _
    %2134 = vsyncpa [#allocation3], 1

</llo_original>
